<compile_context>
chip_gen: v7x
topology: tpu7x:2x2x1
jax: 0.10.0
libtpu: 0.0.40
codegen_flags: <defaults>
</compile_context>

<pallas_src>
import functools

import jax
import jax.numpy as jnp
from jax.experimental import pallas as pl
from jax.experimental.pallas import tpu as pltpu

# Geometry (NatureEncoder on 2x64x64 stacked frames):
#   conv1: 2->32,  k=8, s=4   64x64 -> 15x15 (only rows/cols 0..13 are used)
#   conv2: 32->64, k=4, s=2   15x15 -> 6x6
#   conv3: 64->64, k=3, s=1   6x6   -> 4x4
_R1 = 448   # conv1 im2col rows / element: 4 kw2-blocks x (2 parities x 7 x 8)
_R2 = 48    # conv2 rows / element: 6 out-rows x 8 (6 real + 2 padded) out-cols
_R3 = 16    # conv3 rows / element: 4 x 4


# ---------------------------------------------------------------------------
# Fused forward kernel: one grid step == block_b batch elements
# ---------------------------------------------------------------------------
def _encoder_traj_kernel(p1_ref, w1_ref, b1_ref, w2_ref, b2_ref, w3_ref, b3_ref,
                         wp_ref, bp_ref, o_ref):
    bb = o_ref.shape[0]                      # batch elements in this grid step
    f32 = jnp.float32

    w1 = w1_ref[...]; b1 = b1_ref[...]
    w2 = w2_ref[...]; b2 = b2_ref[...]
    w3 = w3_ref[...]; b3 = b3_ref[...]
    wp = wp_ref[...]; bp = bp_ref[...]
    cdt = w2.dtype                           # MXU input dtype (f32 or bf16)

    # ---- conv1: one matmul on the wrapper-built lane-dense im2col ----------
    # p1 rows / element: (kw2, parity, r2, j_slot) ; lanes: (kh1, kw1, cin)=128
    h1 = jnp.dot(p1_ref[...], w1, preferred_element_type=f32)
    h1 = jnp.maximum(h1 + b1, 0.0)                                # (bb*448, 32)

    # ---- conv2 im2col: contiguous 8-aligned row slices + wide lane concats --
    p2_blocks = []
    for e in range(bb):
        base = e * _R1
        # pack the 4 kw2 blocks into 128 lanes: rows (parity, r2, j_slot),
        # lanes (kw2, c32)
        s1c = jnp.concatenate(
            [h1[base + 112 * k: base + 112 * k + 112, :] for k in range(4)],
            axis=1)                                               # (112, 128)
        slabs = []
        for kh2 in range(4):
            start = (kh2 % 2) * 56 + (kh2 // 2) * 8               # 0, 56, 8, 64
            slabs.append(s1c[start:start + 48, :])                # (48, 128)
        p2_blocks.append(jnp.concatenate(slabs, axis=1))          # (48, 512)
    p2 = jnp.concatenate(p2_blocks, axis=0)                       # (bb*48, 512)

    h2 = jnp.dot(p2.astype(cdt), w2, preferred_element_type=f32)
    h2 = jnp.maximum(h2 + b2, 0.0)             # (bb*48, 64), rows (e, i, j_slot)

    # ---- conv3 im2col: 6 row reads / element, small static sub-slices ------
    p3_blocks = []
    for e in range(bb):
        base = e * _R2
        rows = [h2[base + 8 * t: base + 8 * t + 8, :] for t in range(6)]  # (8,64)
        pieces = []
        for kh3 in range(3):
            for kw3 in range(3):
                pieces.append(jnp.concatenate(
                    [rows[kh3 + i3][kw3:kw3 + 4, :] for i3 in range(4)],
                    axis=0))                                      # (16, 64)
        p3_blocks.append(jnp.concatenate(pieces, axis=1))         # (16, 576)
    p3 = jnp.concatenate(p3_blocks, axis=0)                       # (bb*16, 576)

    h3 = jnp.dot(p3.astype(cdt), w3, preferred_element_type=f32)
    h3 = jnp.maximum(h3 + b3, 0.0)                                # (bb*16, 64)

    # ---- 4x4 spatial mean + (pre-scaled) linear pose head ------------------
    feat = jnp.mean(h3.reshape(bb, 16, 64), axis=1)               # (bb, 64)
    pose = jnp.dot(feat, wp, preferred_element_type=f32) + bp     # (bb, 6)
    o_ref[...] = pose.reshape(bb, 1, 6).astype(o_ref.dtype)


# ---------------------------------------------------------------------------
# Wrapper-side conv1 im2col (cheap XLA layout plumbing, runs once per call)
# ---------------------------------------------------------------------------
def _conv1_im2col(x_nhwc):
    """(B,64,64,2) -> (B,448,128) conv1 patches.

    Per element the 448 rows are ordered (kw2, parity, r2, j_slot):
      kw2    = conv2 column tap (0..3)        -> conv1 col s = 2*j + kw2
      parity = conv1 output row parity        -> conv1 row r = 2*r2 + parity
      r2     = 0..6, j_slot = 0..7 (j=0..5 real, 6..7 zero padding)
    Lanes are (kh1, kw1, cin) = 8*8*2 = 128, matching the (128,32) w1 matrix.
    """
    B = x_nhwc.shape[0]
    pieces = []
    for kw2 in range(4):
        for parity in range(2):
            xs = x_nhwc[:, 4 * parity:4 * parity + 56,
                        4 * kw2:4 * kw2 + 48, :]          # (B, 56, 48, 2)
            xs = xs.reshape(B, 7, 8, 6, 8, 2)             # (B, r2, kh1, j, kw1, c)
            xs = xs.transpose(0, 1, 3, 2, 4, 5)           # (B, r2, j, kh1, kw1, c)
            xs = xs.reshape(B, 7, 6, 128)
            xs = jnp.pad(xs, ((0, 0), (0, 0), (0, 2), (0, 0)))   # j: 6 -> 8
            pieces.append(xs.reshape(B, 56, 128))
    return jnp.concatenate(pieces, axis=1)                # (B, 448, 128)


def _pick_block_b(B):
    for bb in (32, 16, 8, 4, 2):
        if B % bb == 0 and B // bb >= 2:      # keep >=2 grid steps (v7x: 2 TCs)
            return bb
    return 1


# ---------------------------------------------------------------------------
# Public forward
# ---------------------------------------------------------------------------
def encoder_traj(x_nchw, params, scale_rotate, scale_translate, *,
                 mxu_dtype=jnp.bfloat16, block_b=None):
    B, C, H, W = x_nchw.shape
    assert (C, H, W) == (2, 64, 64), "kernel is specialized for 2x64x64 frames"
    if block_b is None:
        block_b = _pick_block_b(B)
    assert B % block_b == 0
    grid = (B // block_b,)

    x_nhwc = jnp.transpose(x_nchw, (0, 2, 3, 1)).astype(jnp.float32)
    p1 = _conv1_im2col(x_nhwc).reshape(B * _R1, 128).astype(mxu_dtype)

    w1 = params["w1"].astype(mxu_dtype)
    w2 = params["w2"].astype(mxu_dtype)
    w3 = params["w3"].astype(mxu_dtype)
    b1 = params["b1"].astype(jnp.float32)
    b2 = params["b2"].astype(jnp.float32)
    b3 = params["b3"].astype(jnp.float32)
    # Fold rot/trans scaling into the (linear) pose head -> runtime scales,
    # no recompilation when they change.
    scale = jnp.concatenate([jnp.full((3,), scale_rotate, jnp.float32),
                             jnp.full((3,), scale_translate, jnp.float32)])
    wp = params["wp"].astype(jnp.float32) * scale[None, :]
    bp = params["bp"].astype(jnp.float32) * scale[None, :]

    itemsize = jnp.dtype(mxu_dtype).itemsize
    flops = 2 * B * (_R1 * 128 * 32 + _R2 * 512 * 64 + _R3 * 576 * 64 + 64 * 6)
    bytes_accessed = (B * _R1 * 128 * itemsize
                      + (128 * 32 + 512 * 64 + 576 * 64) * itemsize
                      + (32 + 64 + 64 + 64 * 6 + 6) * 4
                      + B * 6 * 4)

    out = pl.pallas_call(
        _encoder_traj_kernel,
        out_shape=jax.ShapeDtypeStruct((B, 1, 6), jnp.float32),
        grid=grid,
        in_specs=[
            pl.BlockSpec((block_b * _R1, 128), lambda b: (b, 0)),   # conv1 patches
            pl.BlockSpec((128, 32), lambda b: (0, 0)),              # w1
            pl.BlockSpec((1, 32), lambda b: (0, 0)),                # b1
            pl.BlockSpec((512, 64), lambda b: (0, 0)),              # w2
            pl.BlockSpec((1, 64), lambda b: (0, 0)),                # b2
            pl.BlockSpec((576, 64), lambda b: (0, 0)),              # w3
            pl.BlockSpec((1, 64), lambda b: (0, 0)),                # b3
            pl.BlockSpec((64, 6), lambda b: (0, 0)),                # wp (pre-scaled)
            pl.BlockSpec((1, 6), lambda b: (0, 0)),                 # bp (pre-scaled)
        ],
        out_specs=pl.BlockSpec((block_b, 1, 6), lambda b: (b, 0, 0)),
        compiler_params=pltpu.CompilerParams(dimension_semantics=("parallel",)),
        cost_estimate=pl.CostEstimate(flops=flops, transcendentals=0,
                                      bytes_accessed=bytes_accessed),
    )(p1, w1, b1, w2, b2, w3, b3, wp, bp)
    return out.reshape(B, 6)


# ---------------------------------------------------------------------------
# Parameters (xavier_uniform_ weights, zero biases) + PyTorch converter
# ---------------------------------------------------------------------------
def conv_weight_from_torch_layout(w_oihw):
    """PyTorch Conv2d weight (cout,cin,kh,kw) -> matmul form (kh*kw*cin, cout)."""
    w = jnp.asarray(w_oihw, jnp.float32)
    cout, cin, kh, kw = w.shape
    return jnp.transpose(w, (2, 3, 1, 0)).reshape(kh * kw * cin, cout)


def init_params(key):
    def xavier(k_, k, cin, cout):
        fan_in, fan_out = cin * k * k, cout * k * k
        limit = (6.0 / (fan_in + fan_out)) ** 0.5
        # layout (kh, kw, cin, cout); see conv_weight_from_torch_layout
        return jax.random.uniform(k_, (k, k, cin, cout), jnp.float32, -limit, limit)

    k1, k2, k3, k4 = jax.random.split(key, 4)
    return {
        "w1": xavier(k1, 8, 2, 32).reshape(128, 32),
        "b1": jnp.zeros((1, 32), jnp.float32),
        "w2": xavier(k2, 4, 32, 64).reshape(512, 64),
        "b2": jnp.zeros((1, 64), jnp.float32),
        "w3": xavier(k3, 3, 64, 64).reshape(576, 64),
        "b3": jnp.zeros((1, 64), jnp.float32),
        "wp": xavier(k4, 1, 64, 6).reshape(64, 6),
        "bp": jnp.zeros((1, 6), jnp.float32),
    }


# ---------------------------------------------------------------------------
# Pure-JAX reference (self-check)
# ---------------------------------------------------------------------------
def _ref_forward(x_nchw, params, sr, st):
    def conv(x, w_flat, k, cin, cout, stride):
        w = w_flat.reshape(k, k, cin, cout)
        return jax.lax.conv_general_dilated(
            x, w, (stride, stride), "VALID",
            dimension_numbers=("NHWC", "HWIO", "NHWC"),
            precision=jax.lax.Precision.HIGHEST)

    x = jnp.transpose(x_nchw, (0, 2, 3, 1)).astype(jnp.float32)
    x = jax.nn.relu(conv(x, params["w1"], 8, 2, 32, 4) + params["b1"].reshape(1, 1, 1, 32))
    x = jax.nn.relu(conv(x, params["w2"], 4, 32, 64, 2) + params["b2"].reshape(1, 1, 1, 64))
    x = jax.nn.relu(conv(x, params["w3"], 3, 64, 64, 1) + params["b3"].reshape(1, 1, 1, 64))
    pose = conv(x, params["wp"], 1, 64, 6, 1) + params["bp"].reshape(1, 1, 1, 6)
    pose = pose.mean(axis=(1, 2))
    return jnp.concatenate([pose[:, :3] * sr, pose[:, 3:] * st], axis=1)


if __name__ == "__main__":
    key = jax.random.PRNGKey(0)
    kp, kx = jax.random.split(key)
    params = init_params(kp)

    # input_frames: (B=2, C=2 stacked frames, H=64, W=64), NCHW as in PyTorch.
    x = jax.random.normal(kx, (2, 2, 64, 64), jnp.float32)

    ref = jax.block_until_ready(_ref_forward(x, params, 0.01, 0.01))

    # Exact-ish f32 MXU path: tight check against the HIGHEST-precision reference.
    fwd_f32 = jax.jit(functools.partial(encoder_traj, mxu_dtype=jnp.float32))
    out_f32 = jax.block_until_ready(fwd_f32(x, params, 0.01, 0.01))
    assert out_f32.shape == (2, 6) and out_f32.dtype == jnp.float32
    assert jnp.allclose(out_f32, ref, atol=2e-4, rtol=2e-2), (out_f32, ref)

    # bf16 MXU-input path (v6e/v7x fast path, f32 accumulation): looser check.
    fwd_bf16 = jax.jit(functools.partial(encoder_traj, mxu_dtype=jnp.bfloat16))
    out_bf16 = jax.block_until_ready(fwd_bf16(x, params, 0.01, 0.01))
    assert out_bf16.shape == (2, 6)
    assert jnp.allclose(out_bf16, ref, atol=2e-3, rtol=1e-1), (out_bf16, ref)

    print("KERNEL_OK")
</pallas_src>

<mosaic_0001>
module attributes {stable_mosaic.version = 11 : i64} {
  func.func @_encoder_traj_kernel(%arg0: i32, %arg1: memref<448x128xf32, #tpu.memory_space<vmem>>, %arg2: memref<128x32xf32, #tpu.memory_space<vmem>>, %arg3: memref<1x32xf32, #tpu.memory_space<vmem>>, %arg4: memref<512x64xf32, #tpu.memory_space<vmem>>, %arg5: memref<1x64xf32, #tpu.memory_space<vmem>>, %arg6: memref<576x64xf32, #tpu.memory_space<vmem>>, %arg7: memref<1x64xf32, #tpu.memory_space<vmem>>, %arg8: memref<64x6xf32, #tpu.memory_space<vmem>>, %arg9: memref<1x6xf32, #tpu.memory_space<vmem>>, %arg10: memref<1x1x6xf32, #tpu.memory_space<vmem>>) attributes {dimension_semantics = [#tpu.dimension_semantics<parallel>], iteration_bounds = array<i64: 2>, scalar_prefetch = 0 : i64, scratch_operands = 0 : i64, tpu.core_type = #tpu.core_type<tc>, window_params = [{transform_indices = @transform_0, window_bounds = array<i64: 448, 128>}, {pipeline_mode = #tpu.pipeline_mode<synchronous>, transform_indices = @transform_1, window_bounds = array<i64: 128, 32>}, {pipeline_mode = #tpu.pipeline_mode<synchronous>, transform_indices = @transform_2, window_bounds = array<i64: 1, 32>}, {pipeline_mode = #tpu.pipeline_mode<synchronous>, transform_indices = @transform_3, window_bounds = array<i64: 512, 64>}, {pipeline_mode = #tpu.pipeline_mode<synchronous>, transform_indices = @transform_4, window_bounds = array<i64: 1, 64>}, {pipeline_mode = #tpu.pipeline_mode<synchronous>, transform_indices = @transform_5, window_bounds = array<i64: 576, 64>}, {pipeline_mode = #tpu.pipeline_mode<synchronous>, transform_indices = @transform_6, window_bounds = array<i64: 1, 64>}, {pipeline_mode = #tpu.pipeline_mode<synchronous>, transform_indices = @transform_7, window_bounds = array<i64: 64, 6>}, {pipeline_mode = #tpu.pipeline_mode<synchronous>, transform_indices = @transform_8, window_bounds = array<i64: 1, 6>}, {transform_indices = @transform_9, window_bounds = array<i64: 1, 1, 6>}]} {
    %c0 = arith.constant 0 : index
    %c0_0 = arith.constant 0 : index
    %0 = vector.load %arg2[%c0, %c0_0] : memref<128x32xf32, #tpu.memory_space<vmem>>, vector<128x32xf32>
    %c0_1 = arith.constant 0 : index
    %c0_2 = arith.constant 0 : index
    %1 = vector.load %arg3[%c0_1, %c0_2] : memref<1x32xf32, #tpu.memory_space<vmem>>, vector<1x32xf32>
    %c0_3 = arith.constant 0 : index
    %c0_4 = arith.constant 0 : index
    %2 = vector.load %arg4[%c0_3, %c0_4] : memref<512x64xf32, #tpu.memory_space<vmem>>, vector<512x64xf32>
    %c0_5 = arith.constant 0 : index
    %c0_6 = arith.constant 0 : index
    %3 = vector.load %arg5[%c0_5, %c0_6] : memref<1x64xf32, #tpu.memory_space<vmem>>, vector<1x64xf32>
    %c0_7 = arith.constant 0 : index
    %c0_8 = arith.constant 0 : index
    %4 = vector.load %arg6[%c0_7, %c0_8] : memref<576x64xf32, #tpu.memory_space<vmem>>, vector<576x64xf32>
    %c0_9 = arith.constant 0 : index
    %c0_10 = arith.constant 0 : index
    %5 = vector.load %arg7[%c0_9, %c0_10] : memref<1x64xf32, #tpu.memory_space<vmem>>, vector<1x64xf32>
    %c0_11 = arith.constant 0 : index
    %c0_12 = arith.constant 0 : index
    %6 = vector.load %arg8[%c0_11, %c0_12] : memref<64x6xf32, #tpu.memory_space<vmem>>, vector<64x6xf32>
    %c0_13 = arith.constant 0 : index
    %c0_14 = arith.constant 0 : index
    %7 = vector.load %arg9[%c0_13, %c0_14] : memref<1x6xf32, #tpu.memory_space<vmem>>, vector<1x6xf32>
    %c0_15 = arith.constant 0 : index
    %c0_16 = arith.constant 0 : index
    %8 = vector.load %arg1[%c0_15, %c0_16] : memref<448x128xf32, #tpu.memory_space<vmem>>, vector<448x128xf32>
    %cst = arith.constant dense<0.000000e+00> : vector<448x32xf32>
    %9 = tpu.matmul %8, %0, %cst {dimension_numbers = #tpu.dot_dimension_numbers<[1], [0], [0], [1], [0, 0, 1, 1], [], []>} : vector<448x128xf32>, vector<128x32xf32>, vector<448x32xf32> -> vector<448x32xf32>
    %10 = vector.broadcast %1 : vector<1x32xf32> to vector<448x32xf32>
    %11 = arith.addf %9, %10 : vector<448x32xf32>
    %cst_17 = arith.constant 0.000000e+00 : f32
    %12 = vector.broadcast %cst_17 : f32 to vector<448x32xf32>
    %13 = arith.maximumf %11, %12 : vector<448x32xf32>
    %14 = vector.extract_strided_slice %13 {offsets = [0, 0], sizes = [112, 32], strides = [1, 1]} : vector<448x32xf32> to vector<112x32xf32>
    %15 = vector.extract_strided_slice %13 {offsets = [112, 0], sizes = [112, 32], strides = [1, 1]} : vector<448x32xf32> to vector<112x32xf32>
    %16 = vector.extract_strided_slice %13 {offsets = [224, 0], sizes = [112, 32], strides = [1, 1]} : vector<448x32xf32> to vector<112x32xf32>
    %17 = vector.extract_strided_slice %13 {offsets = [336, 0], sizes = [112, 32], strides = [1, 1]} : vector<448x32xf32> to vector<112x32xf32>
    %18 = tpu.concatenate %14, %15, %16, %17 in 1 : vector<112x32xf32>, vector<112x32xf32>, vector<112x32xf32>, vector<112x32xf32> -> vector<112x128xf32>
    %19 = vector.extract_strided_slice %18 {offsets = [0, 0], sizes = [48, 128], strides = [1, 1]} : vector<112x128xf32> to vector<48x128xf32>
    %20 = vector.extract_strided_slice %18 {offsets = [56, 0], sizes = [48, 128], strides = [1, 1]} : vector<112x128xf32> to vector<48x128xf32>
    %21 = vector.extract_strided_slice %18 {offsets = [8, 0], sizes = [48, 128], strides = [1, 1]} : vector<112x128xf32> to vector<48x128xf32>
    %22 = vector.extract_strided_slice %18 {offsets = [64, 0], sizes = [48, 128], strides = [1, 1]} : vector<112x128xf32> to vector<48x128xf32>
    %23 = tpu.concatenate %19, %20, %21, %22 in 1 : vector<48x128xf32>, vector<48x128xf32>, vector<48x128xf32>, vector<48x128xf32> -> vector<48x512xf32>
    %cst_18 = arith.constant dense<0.000000e+00> : vector<48x64xf32>
    %24 = tpu.matmul %23, %2, %cst_18 {dimension_numbers = #tpu.dot_dimension_numbers<[1], [0], [0], [1], [0, 0, 1, 1], [], []>} : vector<48x512xf32>, vector<512x64xf32>, vector<48x64xf32> -> vector<48x64xf32>
    %25 = vector.broadcast %3 : vector<1x64xf32> to vector<48x64xf32>
    %26 = arith.addf %24, %25 : vector<48x64xf32>
    %cst_19 = arith.constant 0.000000e+00 : f32
    %27 = vector.broadcast %cst_19 : f32 to vector<48x64xf32>
    %28 = arith.maximumf %26, %27 : vector<48x64xf32>
    %29 = vector.extract_strided_slice %28 {offsets = [0, 0], sizes = [8, 64], strides = [1, 1]} : vector<48x64xf32> to vector<8x64xf32>
    %30 = vector.extract_strided_slice %28 {offsets = [8, 0], sizes = [8, 64], strides = [1, 1]} : vector<48x64xf32> to vector<8x64xf32>
    %31 = vector.extract_strided_slice %28 {offsets = [16, 0], sizes = [8, 64], strides = [1, 1]} : vector<48x64xf32> to vector<8x64xf32>
    %32 = vector.extract_strided_slice %28 {offsets = [24, 0], sizes = [8, 64], strides = [1, 1]} : vector<48x64xf32> to vector<8x64xf32>
    %33 = vector.extract_strided_slice %28 {offsets = [32, 0], sizes = [8, 64], strides = [1, 1]} : vector<48x64xf32> to vector<8x64xf32>
    %34 = vector.extract_strided_slice %28 {offsets = [40, 0], sizes = [8, 64], strides = [1, 1]} : vector<48x64xf32> to vector<8x64xf32>
    %35 = vector.extract_strided_slice %29 {offsets = [0, 0], sizes = [4, 64], strides = [1, 1]} : vector<8x64xf32> to vector<4x64xf32>
    %36 = vector.extract_strided_slice %30 {offsets = [0, 0], sizes = [4, 64], strides = [1, 1]} : vector<8x64xf32> to vector<4x64xf32>
    %37 = vector.extract_strided_slice %31 {offsets = [0, 0], sizes = [4, 64], strides = [1, 1]} : vector<8x64xf32> to vector<4x64xf32>
    %38 = vector.extract_strided_slice %32 {offsets = [0, 0], sizes = [4, 64], strides = [1, 1]} : vector<8x64xf32> to vector<4x64xf32>
    %39 = tpu.concatenate %35, %36, %37, %38 in 0 : vector<4x64xf32>, vector<4x64xf32>, vector<4x64xf32>, vector<4x64xf32> -> vector<16x64xf32>
    %40 = vector.extract_strided_slice %29 {offsets = [1, 0], sizes = [4, 64], strides = [1, 1]} : vector<8x64xf32> to vector<4x64xf32>
    %41 = vector.extract_strided_slice %30 {offsets = [1, 0], sizes = [4, 64], strides = [1, 1]} : vector<8x64xf32> to vector<4x64xf32>
    %42 = vector.extract_strided_slice %31 {offsets = [1, 0], sizes = [4, 64], strides = [1, 1]} : vector<8x64xf32> to vector<4x64xf32>
    %43 = vector.extract_strided_slice %32 {offsets = [1, 0], sizes = [4, 64], strides = [1, 1]} : vector<8x64xf32> to vector<4x64xf32>
    %44 = tpu.concatenate %40, %41, %42, %43 in 0 : vector<4x64xf32>, vector<4x64xf32>, vector<4x64xf32>, vector<4x64xf32> -> vector<16x64xf32>
    %45 = vector.extract_strided_slice %29 {offsets = [2, 0], sizes = [4, 64], strides = [1, 1]} : vector<8x64xf32> to vector<4x64xf32>
    %46 = vector.extract_strided_slice %30 {offsets = [2, 0], sizes = [4, 64], strides = [1, 1]} : vector<8x64xf32> to vector<4x64xf32>
    %47 = vector.extract_strided_slice %31 {offsets = [2, 0], sizes = [4, 64], strides = [1, 1]} : vector<8x64xf32> to vector<4x64xf32>
    %48 = vector.extract_strided_slice %32 {offsets = [2, 0], sizes = [4, 64], strides = [1, 1]} : vector<8x64xf32> to vector<4x64xf32>
    %49 = tpu.concatenate %45, %46, %47, %48 in 0 : vector<4x64xf32>, vector<4x64xf32>, vector<4x64xf32>, vector<4x64xf32> -> vector<16x64xf32>
    %50 = vector.extract_strided_slice %30 {offsets = [0, 0], sizes = [4, 64], strides = [1, 1]} : vector<8x64xf32> to vector<4x64xf32>
    %51 = vector.extract_strided_slice %31 {offsets = [0, 0], sizes = [4, 64], strides = [1, 1]} : vector<8x64xf32> to vector<4x64xf32>
    %52 = vector.extract_strided_slice %32 {offsets = [0, 0], sizes = [4, 64], strides = [1, 1]} : vector<8x64xf32> to vector<4x64xf32>
    %53 = vector.extract_strided_slice %33 {offsets = [0, 0], sizes = [4, 64], strides = [1, 1]} : vector<8x64xf32> to vector<4x64xf32>
    %54 = tpu.concatenate %50, %51, %52, %53 in 0 : vector<4x64xf32>, vector<4x64xf32>, vector<4x64xf32>, vector<4x64xf32> -> vector<16x64xf32>
    %55 = vector.extract_strided_slice %30 {offsets = [1, 0], sizes = [4, 64], strides = [1, 1]} : vector<8x64xf32> to vector<4x64xf32>
    %56 = vector.extract_strided_slice %31 {offsets = [1, 0], sizes = [4, 64], strides = [1, 1]} : vector<8x64xf32> to vector<4x64xf32>
    %57 = vector.extract_strided_slice %32 {offsets = [1, 0], sizes = [4, 64], strides = [1, 1]} : vector<8x64xf32> to vector<4x64xf32>
    %58 = vector.extract_strided_slice %33 {offsets = [1, 0], sizes = [4, 64], strides = [1, 1]} : vector<8x64xf32> to vector<4x64xf32>
    %59 = tpu.concatenate %55, %56, %57, %58 in 0 : vector<4x64xf32>, vector<4x64xf32>, vector<4x64xf32>, vector<4x64xf32> -> vector<16x64xf32>
    %60 = vector.extract_strided_slice %30 {offsets = [2, 0], sizes = [4, 64], strides = [1, 1]} : vector<8x64xf32> to vector<4x64xf32>
    %61 = vector.extract_strided_slice %31 {offsets = [2, 0], sizes = [4, 64], strides = [1, 1]} : vector<8x64xf32> to vector<4x64xf32>
    %62 = vector.extract_strided_slice %32 {offsets = [2, 0], sizes = [4, 64], strides = [1, 1]} : vector<8x64xf32> to vector<4x64xf32>
    %63 = vector.extract_strided_slice %33 {offsets = [2, 0], sizes = [4, 64], strides = [1, 1]} : vector<8x64xf32> to vector<4x64xf32>
    %64 = tpu.concatenate %60, %61, %62, %63 in 0 : vector<4x64xf32>, vector<4x64xf32>, vector<4x64xf32>, vector<4x64xf32> -> vector<16x64xf32>
    %65 = vector.extract_strided_slice %31 {offsets = [0, 0], sizes = [4, 64], strides = [1, 1]} : vector<8x64xf32> to vector<4x64xf32>
    %66 = vector.extract_strided_slice %32 {offsets = [0, 0], sizes = [4, 64], strides = [1, 1]} : vector<8x64xf32> to vector<4x64xf32>
    %67 = vector.extract_strided_slice %33 {offsets = [0, 0], sizes = [4, 64], strides = [1, 1]} : vector<8x64xf32> to vector<4x64xf32>
    %68 = vector.extract_strided_slice %34 {offsets = [0, 0], sizes = [4, 64], strides = [1, 1]} : vector<8x64xf32> to vector<4x64xf32>
    %69 = tpu.concatenate %65, %66, %67, %68 in 0 : vector<4x64xf32>, vector<4x64xf32>, vector<4x64xf32>, vector<4x64xf32> -> vector<16x64xf32>
    %70 = vector.extract_strided_slice %31 {offsets = [1, 0], sizes = [4, 64], strides = [1, 1]} : vector<8x64xf32> to vector<4x64xf32>
    %71 = vector.extract_strided_slice %32 {offsets = [1, 0], sizes = [4, 64], strides = [1, 1]} : vector<8x64xf32> to vector<4x64xf32>
    %72 = vector.extract_strided_slice %33 {offsets = [1, 0], sizes = [4, 64], strides = [1, 1]} : vector<8x64xf32> to vector<4x64xf32>
    %73 = vector.extract_strided_slice %34 {offsets = [1, 0], sizes = [4, 64], strides = [1, 1]} : vector<8x64xf32> to vector<4x64xf32>
    %74 = tpu.concatenate %70, %71, %72, %73 in 0 : vector<4x64xf32>, vector<4x64xf32>, vector<4x64xf32>, vector<4x64xf32> -> vector<16x64xf32>
    %75 = vector.extract_strided_slice %31 {offsets = [2, 0], sizes = [4, 64], strides = [1, 1]} : vector<8x64xf32> to vector<4x64xf32>
    %76 = vector.extract_strided_slice %32 {offsets = [2, 0], sizes = [4, 64], strides = [1, 1]} : vector<8x64xf32> to vector<4x64xf32>
    %77 = vector.extract_strided_slice %33 {offsets = [2, 0], sizes = [4, 64], strides = [1, 1]} : vector<8x64xf32> to vector<4x64xf32>
    %78 = vector.extract_strided_slice %34 {offsets = [2, 0], sizes = [4, 64], strides = [1, 1]} : vector<8x64xf32> to vector<4x64xf32>
    %79 = tpu.concatenate %75, %76, %77, %78 in 0 : vector<4x64xf32>, vector<4x64xf32>, vector<4x64xf32>, vector<4x64xf32> -> vector<16x64xf32>
    %80 = tpu.concatenate %39, %44, %49, %54, %59, %64, %69, %74, %79 in 1 : vector<16x64xf32>, vector<16x64xf32>, vector<16x64xf32>, vector<16x64xf32>, vector<16x64xf32>, vector<16x64xf32>, vector<16x64xf32>, vector<16x64xf32>, vector<16x64xf32> -> vector<16x576xf32>
    %cst_20 = arith.constant dense<0.000000e+00> : vector<16x64xf32>
    %81 = tpu.matmul %80, %4, %cst_20 {dimension_numbers = #tpu.dot_dimension_numbers<[1], [0], [0], [1], [0, 0, 1, 1], [], []>} : vector<16x576xf32>, vector<576x64xf32>, vector<16x64xf32> -> vector<16x64xf32>
    %82 = vector.broadcast %5 : vector<1x64xf32> to vector<16x64xf32>
    %83 = arith.addf %81, %82 : vector<16x64xf32>
    %cst_21 = arith.constant 0.000000e+00 : f32
    %84 = vector.broadcast %cst_21 : f32 to vector<16x64xf32>
    %85 = arith.maximumf %83, %84 : vector<16x64xf32>
    %86 = vector.shape_cast %85 : vector<16x64xf32> to vector<1x16x64xf32>
    %cst_22 = arith.constant dense<0.000000e+00> : vector<1x64xf32>
    %87 = vector.multi_reduction <add>, %86, %cst_22 [1] : vector<1x16x64xf32> to vector<1x64xf32>
    %cst_23 = arith.constant 1.600000e+01 : f32
    %88 = vector.broadcast %cst_23 : f32 to vector<1x64xf32>
    %89 = arith.divf %87, %88 : vector<1x64xf32>
    %cst_24 = arith.constant dense<0.000000e+00> : vector<1x6xf32>
    %90 = tpu.matmul %89, %6, %cst_24 {dimension_numbers = #tpu.dot_dimension_numbers<[1], [0], [0], [1], [0, 0, 1, 1], [], []>} : vector<1x64xf32>, vector<64x6xf32>, vector<1x6xf32> -> vector<1x6xf32>
    %91 = arith.addf %90, %7 : vector<1x6xf32>
    %92 = vector.shape_cast %91 : vector<1x6xf32> to vector<1x1x6xf32>
    %c0_25 = arith.constant 0 : index
    %c0_26 = arith.constant 0 : index
    %c0_27 = arith.constant 0 : index
    %93 = vector.load %arg10[%c0_25, %c0_26, %c0_27] : memref<1x1x6xf32, #tpu.memory_space<vmem>>, vector<1x1x6xf32>
    tpu.vector_store %arg10[%c0_25, %c0_26, %c0_27], %92 {strides = array<i32>} : memref<1x1x6xf32, #tpu.memory_space<vmem>>, vector<1x1x6xf32>,
    return
  }
  func.func @transform_0(%arg0: i32) -> (i32, i32) {
    %c0_i32 = arith.constant 0 : i32
    %c0_i32_0 = arith.constant 0 : i32
    return %arg0, %c0_i32 : i32, i32
  }
  func.func @transform_1(%arg0: i32) -> (i32, i32) {
    %c0_i32 = arith.constant 0 : i32
    %c0_i32_0 = arith.constant 0 : i32
    %c0_i32_1 = arith.constant 0 : i32
    return %c0_i32, %c0_i32_0 : i32, i32
  }
  func.func @transform_2(%arg0: i32) -> (i32, i32) {
    %c0_i32 = arith.constant 0 : i32
    %c0_i32_0 = arith.constant 0 : i32
    %c0_i32_1 = arith.constant 0 : i32
    return %c0_i32, %c0_i32_0 : i32, i32
  }
  func.func @transform_3(%arg0: i32) -> (i32, i32) {
    %c0_i32 = arith.constant 0 : i32
    %c0_i32_0 = arith.constant 0 : i32
    %c0_i32_1 = arith.constant 0 : i32
    return %c0_i32, %c0_i32_0 : i32, i32
  }
  func.func @transform_4(%arg0: i32) -> (i32, i32) {
    %c0_i32 = arith.constant 0 : i32
    %c0_i32_0 = arith.constant 0 : i32
    %c0_i32_1 = arith.constant 0 : i32
    return %c0_i32, %c0_i32_0 : i32, i32
  }
  func.func @transform_5(%arg0: i32) -> (i32, i32) {
    %c0_i32 = arith.constant 0 : i32
    %c0_i32_0 = arith.constant 0 : i32
    %c0_i32_1 = arith.constant 0 : i32
    return %c0_i32, %c0_i32_0 : i32, i32
  }
  func.func @transform_6(%arg0: i32) -> (i32, i32) {
    %c0_i32 = arith.constant 0 : i32
    %c0_i32_0 = arith.constant 0 : i32
    %c0_i32_1 = arith.constant 0 : i32
    return %c0_i32, %c0_i32_0 : i32, i32
  }
  func.func @transform_7(%arg0: i32) -> (i32, i32) {
    %c0_i32 = arith.constant 0 : i32
    %c0_i32_0 = arith.constant 0 : i32
    %c0_i32_1 = arith.constant 0 : i32
    return %c0_i32, %c0_i32_0 : i32, i32
  }
  func.func @transform_8(%arg0: i32) -> (i32, i32) {
    %c0_i32 = arith.constant 0 : i32
    %c0_i32_0 = arith.constant 0 : i32
    %c0_i32_1 = arith.constant 0 : i32
    return %c0_i32, %c0_i32_0 : i32, i32
  }
  func.func @transform_9(%arg0: i32) -> (i32, i32, i32) {
    %c0_i32 = arith.constant 0 : i32
    %c0_i32_0 = arith.constant 0 : i32
    %c0_i32_1 = arith.constant 0 : i32
    return %arg0, %c0_i32, %c0_i32_0 : i32, i32, i32
  }
}

</mosaic_0001>

<llo_original>
// kernel: encoder_traj.1
$region0: #{encoder_traj.1}
  #allocation0 [shape = 'u32[]', space=smem, size = 0x4, offset = 0x4, fixed_abs, tag = 'smem constant byte address 0x4 - core index']
  #allocation1 [shape = 'u32[144,128]{1,0:T(1,128)}', space=vmem, size = 0x12000, scoped, tag = 'internal scratch']
  %s0 = inlined_call_operand.vmem [shape: f32[896,128], index: 0, kind: input, shape index: {}]
  %s1 = inlined_call_operand.vmem [shape: f32[128,32], index: 1, kind: input, shape index: {}]
  %s2 = inlined_call_operand.vmem [shape: f32[1,32], index: 2, kind: input, shape index: {}]
  %s3 = inlined_call_operand.vmem [shape: f32[512,64], index: 3, kind: input, shape index: {}]
  %s4 = inlined_call_operand.vmem [shape: f32[1,64], index: 4, kind: input, shape index: {}]
  %s5 = inlined_call_operand.vmem [shape: f32[576,64], index: 5, kind: input, shape index: {}]
  %s6 = inlined_call_operand.vmem [shape: f32[1,64], index: 6, kind: input, shape index: {}]
  %s7 = inlined_call_operand.vmem [shape: f32[64,6], index: 7, kind: input, shape index: {}]
  %s8 = inlined_call_operand.vmem [shape: f32[1,6], index: 8, kind: input, shape index: {}]
  %s9 = inlined_call_operand.hbm [shape: f32[2,1,6], index: 9, kind: output, shape index: {}]
  %s10 = sld [smem:[#allocation0]]
  $region69: #{encoder_traj.1} parent=0
    _
  %s12 = ssub.s32 1, %s10
  %s13 = scalar_select 0, %s12, %s10
  $region1: #{encoder_traj.1} parent=0
    #allocation2 [shape = 'u8[1024]{0}', space=vmem, size = 0x400, scoped, tag = 'output window, operand 0']
    #allocation3 [shape = 's32[2]{0}', space=sflag, size = 0x8, scoped, tag = 'scoped memory for encoder_traj.1']
    %14 = vsyncpa [#allocation3], 0
    %s15 = scalar_lea.sflag [#allocation3], 1
    %16 = vsyncpa %s15, 0
    loop: start=0, step=1, limit=4
    $region2: #{encoder_traj.1} parent=1 // loop_pre_header
      _
    $region3: #{encoder_traj.1} parent=1 // loop_header
      %s18 = sphi 0, %s22
      %p19 = scmp.ge.s32.totalorder %s18, 4
      %s28 = sphi 0, %s30
      %s31 = sphi 0, %s28
      %s32 = sphi 0, %s31
      %s48 = sphi 0, %s32
      %s52 = sphi 0, %s52
      %s54 = sphi 0, %s52
      %s55 = sphi 0, %s54
      %s69 = sphi 0, %s55
      %s73 = sphi 0, %s73
      %s75 = sphi 0, %s73
      %s76 = sphi 0, %s75
      %s90 = sphi 0, %s76
      %s94 = sphi 0, %s94
      %s96 = sphi 0, %s94
      %s97 = sphi 0, %s96
      %s111 = sphi 0, %s97
      %s115 = sphi 0, %s115
      %s117 = sphi 0, %s115
      %s118 = sphi 0, %s117
      %s132 = sphi 0, %s118
      %s136 = sphi 0, %s136
      %s138 = sphi 0, %s136
      %s139 = sphi 0, %s138
      %s153 = sphi 0, %s139
      %s157 = sphi 0, %s157
      %s159 = sphi 0, %s157
      %s160 = sphi 0, %s159
      %s174 = sphi 0, %s160
      %s178 = sphi 0, %s178
      %s180 = sphi 0, %s178
      %s181 = sphi 0, %s180
      %s195 = sphi 0, %s181
      %s199 = sphi 0, %s199
      %s201 = sphi 0, %s199
      %s202 = sphi 0, %s201
      %s216 = sphi 0, %s202
      %s222 = sphi 0, %s224
      %s225 = sphi 0, %s222
      %s226 = sphi 0, %s225
      %s242 = sphi 0, %s226
    $region4: #{encoder_traj.1} parent=1 // loop_header_branch
      %21 = sbr.rel (%p19) target = $region8
    $region5: #{encoder_traj.1} parent=1 // loop_body
      %s23 = ssub.s32 %s18, 1
      %s24 = ssub.s32 %s18, 2
      %s25 = sadd.s32 %s18, 1
      %s26 = ssub.s32 %s18, %s25
      %p27 = scmp.eq.s32.totalorder %s26, 0
      %s29 = sadd.s32 %s28, 1
      %s30 = scalar_select %p27, %s28, %s29
      %p33 = pneg %p27
      %p34 = scmp.eq.s32.totalorder %s18, 1
      %p35 = por %p33, %p34
      %p36 = scmp.ne.s32.totalorder %s28, %s31
      %p37 = scmp.eq.s32.totalorder %s18, 0
      %p38 = por %p36, %p37
      %p39 = scmp.ne.s32.totalorder %s28, %s31
      %p40 = scmp.eq.s32.totalorder %s23, 1
      %p41 = por %p39, %p40
      %p42 = scmp.ne.s32.totalorder %s31, %s32
      %p43 = scmp.eq.s32.totalorder %s23, 0
      %p44 = por %p42, %p43
      %p45 = scmp.ne.s32.totalorder %s31, %s32
      %p46 = scmp.eq.s32.totalorder %s24, 1
      %p47 = por %p45, %p46
      %p49 = scmp.ne.s32.totalorder %s32, %s48
      %p50 = scmp.eq.s32.totalorder %s24, 0
      %p51 = por %p49, %p50
      %s53 = sadd.s32 %s52, 1
      %p56 = scmp.eq.s32.totalorder %s18, 1
      %p57 = scmp.ne.s32.totalorder %s52, %s54
      %p58 = scmp.eq.s32.totalorder %s18, 0
      %p59 = por %p57, %p58
      %p60 = scmp.ne.s32.totalorder %s52, %s54
      %p61 = scmp.eq.s32.totalorder %s23, 1
      %p62 = por %p60, %p61
      %p63 = scmp.ne.s32.totalorder %s54, %s55
      %p64 = scmp.eq.s32.totalorder %s23, 0
      %p65 = por %p63, %p64
      %p66 = scmp.ne.s32.totalorder %s54, %s55
      %p67 = scmp.eq.s32.totalorder %s24, 1
      %p68 = por %p66, %p67
      %p70 = scmp.ne.s32.totalorder %s55, %s69
      %p71 = scmp.eq.s32.totalorder %s24, 0
      %p72 = por %p70, %p71
      %s74 = sadd.s32 %s73, 1
      %p77 = scmp.eq.s32.totalorder %s18, 1
      %p78 = scmp.ne.s32.totalorder %s73, %s75
      %p79 = scmp.eq.s32.totalorder %s18, 0
      %p80 = por %p78, %p79
      %p81 = scmp.ne.s32.totalorder %s73, %s75
      %p82 = scmp.eq.s32.totalorder %s23, 1
      %p83 = por %p81, %p82
      %p84 = scmp.ne.s32.totalorder %s75, %s76
      %p85 = scmp.eq.s32.totalorder %s23, 0
      %p86 = por %p84, %p85
      %p87 = scmp.ne.s32.totalorder %s75, %s76
      %p88 = scmp.eq.s32.totalorder %s24, 1
      %p89 = por %p87, %p88
      %p91 = scmp.ne.s32.totalorder %s76, %s90
      %p92 = scmp.eq.s32.totalorder %s24, 0
      %p93 = por %p91, %p92
      %s95 = sadd.s32 %s94, 1
      %p98 = scmp.eq.s32.totalorder %s18, 1
      %p99 = scmp.ne.s32.totalorder %s94, %s96
      %p100 = scmp.eq.s32.totalorder %s18, 0
      %p101 = por %p99, %p100
      %p102 = scmp.ne.s32.totalorder %s94, %s96
      %p103 = scmp.eq.s32.totalorder %s23, 1
      %p104 = por %p102, %p103
      %p105 = scmp.ne.s32.totalorder %s96, %s97
      %p106 = scmp.eq.s32.totalorder %s23, 0
      %p107 = por %p105, %p106
      %p108 = scmp.ne.s32.totalorder %s96, %s97
      %p109 = scmp.eq.s32.totalorder %s24, 1
      %p110 = por %p108, %p109
      %p112 = scmp.ne.s32.totalorder %s97, %s111
      %p113 = scmp.eq.s32.totalorder %s24, 0
      %p114 = por %p112, %p113
      %s116 = sadd.s32 %s115, 1
      %p119 = scmp.eq.s32.totalorder %s18, 1
      %p120 = scmp.ne.s32.totalorder %s115, %s117
      %p121 = scmp.eq.s32.totalorder %s18, 0
      %p122 = por %p120, %p121
      %p123 = scmp.ne.s32.totalorder %s115, %s117
      %p124 = scmp.eq.s32.totalorder %s23, 1
      %p125 = por %p123, %p124
      %p126 = scmp.ne.s32.totalorder %s117, %s118
      %p127 = scmp.eq.s32.totalorder %s23, 0
      %p128 = por %p126, %p127
      %p129 = scmp.ne.s32.totalorder %s117, %s118
      %p130 = scmp.eq.s32.totalorder %s24, 1
      %p131 = por %p129, %p130
      %p133 = scmp.ne.s32.totalorder %s118, %s132
      %p134 = scmp.eq.s32.totalorder %s24, 0
      %p135 = por %p133, %p134
      %s137 = sadd.s32 %s136, 1
      %p140 = scmp.eq.s32.totalorder %s18, 1
      %p141 = scmp.ne.s32.totalorder %s136, %s138
      %p142 = scmp.eq.s32.totalorder %s18, 0
      %p143 = por %p141, %p142
      %p144 = scmp.ne.s32.totalorder %s136, %s138
      %p145 = scmp.eq.s32.totalorder %s23, 1
      %p146 = por %p144, %p145
      %p147 = scmp.ne.s32.totalorder %s138, %s139
      %p148 = scmp.eq.s32.totalorder %s23, 0
      %p149 = por %p147, %p148
      %p150 = scmp.ne.s32.totalorder %s138, %s139
      %p151 = scmp.eq.s32.totalorder %s24, 1
      %p152 = por %p150, %p151
      %p154 = scmp.ne.s32.totalorder %s139, %s153
      %p155 = scmp.eq.s32.totalorder %s24, 0
      %p156 = por %p154, %p155
      %s158 = sadd.s32 %s157, 1
      %p161 = scmp.eq.s32.totalorder %s18, 1
      %p162 = scmp.ne.s32.totalorder %s157, %s159
      %p163 = scmp.eq.s32.totalorder %s18, 0
      %p164 = por %p162, %p163
      %p165 = scmp.ne.s32.totalorder %s157, %s159
      %p166 = scmp.eq.s32.totalorder %s23, 1
      %p167 = por %p165, %p166
      %p168 = scmp.ne.s32.totalorder %s159, %s160
      %p169 = scmp.eq.s32.totalorder %s23, 0
      %p170 = por %p168, %p169
      %p171 = scmp.ne.s32.totalorder %s159, %s160
      %p172 = scmp.eq.s32.totalorder %s24, 1
      %p173 = por %p171, %p172
      %p175 = scmp.ne.s32.totalorder %s160, %s174
      %p176 = scmp.eq.s32.totalorder %s24, 0
      %p177 = por %p175, %p176
      %s179 = sadd.s32 %s178, 1
      %p182 = scmp.eq.s32.totalorder %s18, 1
      %p183 = scmp.ne.s32.totalorder %s178, %s180
      %p184 = scmp.eq.s32.totalorder %s18, 0
      %p185 = por %p183, %p184
      %p186 = scmp.ne.s32.totalorder %s178, %s180
      %p187 = scmp.eq.s32.totalorder %s23, 1
      %p188 = por %p186, %p187
      %p189 = scmp.ne.s32.totalorder %s180, %s181
      %p190 = scmp.eq.s32.totalorder %s23, 0
      %p191 = por %p189, %p190
      %p192 = scmp.ne.s32.totalorder %s180, %s181
      %p193 = scmp.eq.s32.totalorder %s24, 1
      %p194 = por %p192, %p193
      %p196 = scmp.ne.s32.totalorder %s181, %s195
      %p197 = scmp.eq.s32.totalorder %s24, 0
      %p198 = por %p196, %p197
      %s200 = sadd.s32 %s199, 1
      %p203 = scmp.eq.s32.totalorder %s18, 1
      %p204 = scmp.ne.s32.totalorder %s199, %s201
      %p205 = scmp.eq.s32.totalorder %s18, 0
      %p206 = por %p204, %p205
      %p207 = scmp.ne.s32.totalorder %s199, %s201
      %p208 = scmp.eq.s32.totalorder %s23, 1
      %p209 = por %p207, %p208
      %p210 = scmp.ne.s32.totalorder %s201, %s202
      %p211 = scmp.eq.s32.totalorder %s23, 0
      %p212 = por %p210, %p211
      %p213 = scmp.ne.s32.totalorder %s201, %s202
      %p214 = scmp.eq.s32.totalorder %s24, 1
      %p215 = por %p213, %p214
      %p217 = scmp.ne.s32.totalorder %s202, %s216
      %p218 = scmp.eq.s32.totalorder %s24, 0
      %p219 = por %p217, %p218
      %s220 = ssub.s32 %s18, %s25
      %p221 = scmp.eq.s32.totalorder %s220, 0
      %s223 = sadd.s32 %s222, 1
      %s224 = scalar_select %p221, %s222, %s223
      %p227 = pneg %p221
      %p228 = scmp.eq.s32.totalorder %s18, 1
      %p229 = por %p227, %p228
      %p230 = scmp.ne.s32.totalorder %s222, %s225
      %p231 = scmp.eq.s32.totalorder %s18, 0
      %p232 = por %p230, %p231
      %p233 = scmp.ne.s32.totalorder %s222, %s225
      %p234 = scmp.eq.s32.totalorder %s23, 1
      %p235 = por %p233, %p234
      %p236 = scmp.ne.s32.totalorder %s225, %s226
      %p237 = scmp.eq.s32.totalorder %s23, 0
      %p238 = por %p236, %p237
      %p239 = scmp.ne.s32.totalorder %s225, %s226
      %p240 = scmp.eq.s32.totalorder %s24, 1
      %p241 = por %p239, %p240
      %p243 = scmp.ne.s32.totalorder %s226, %s242
      %p244 = scmp.eq.s32.totalorder %s24, 0
      %p245 = por %p243, %p244
      %p246 = scmp.le.s32.totalorder 1, %s18
      %p247 = scmp.lt.s32.totalorder %s18, 3
      %p248 = pnand %p246, %p247
      %p249 = pneg %p248
      // Predicated region
      $region9: #{encoder_traj.1} parent=5 // pred_check
        _
      $region10: #{encoder_traj.1} parent=5 // pred_check_branch
        %251 = sbr.rel (%p248) target = $region12
      $region11: #{encoder_traj.1} parent=5 // pred_region
        %s252 = ssub.s32 %s18, 1
        // Predicated region
        $region13: #{encoder_traj.1} parent=11 // pred_check
          %p253 = pneg %p65
        $region14: #{encoder_traj.1} parent=11 // pred_check_branch
          %255 = sbr.rel (%p253) target = $region16
        $region15: #{encoder_traj.1} parent=11 // pred_region
          _
        $region16: #{encoder_traj.1} parent=11 // pred_fallthru
          _
        // Predicated region
        $region17: #{encoder_traj.1} parent=11 // pred_check
          %p256 = pneg %p86
        $region18: #{encoder_traj.1} parent=11 // pred_check_branch
          %258 = sbr.rel (%p256) target = $region20
        $region19: #{encoder_traj.1} parent=11 // pred_region
          _
        $region20: #{encoder_traj.1} parent=11 // pred_fallthru
          _
        // Predicated region
        $region21: #{encoder_traj.1} parent=11 // pred_check
          %p259 = pneg %p107
        $region22: #{encoder_traj.1} parent=11 // pred_check_branch
          %261 = sbr.rel (%p259) target = $region24
        $region23: #{encoder_traj.1} parent=11 // pred_region
          _
        $region24: #{encoder_traj.1} parent=11 // pred_fallthru
          _
        // Predicated region
        $region25: #{encoder_traj.1} parent=11 // pred_check
          %p262 = pneg %p128
        $region26: #{encoder_traj.1} parent=11 // pred_check_branch
          %264 = sbr.rel (%p262) target = $region28
        $region27: #{encoder_traj.1} parent=11 // pred_region
          _
        $region28: #{encoder_traj.1} parent=11 // pred_fallthru
          _
        // Predicated region
        $region29: #{encoder_traj.1} parent=11 // pred_check
          %p265 = pneg %p149
        $region30: #{encoder_traj.1} parent=11 // pred_check_branch
          %267 = sbr.rel (%p265) target = $region32
        $region31: #{encoder_traj.1} parent=11 // pred_region
          _
        $region32: #{encoder_traj.1} parent=11 // pred_fallthru
          _
        // Predicated region
        $region33: #{encoder_traj.1} parent=11 // pred_check
          %p268 = pneg %p170
        $region34: #{encoder_traj.1} parent=11 // pred_check_branch
          %270 = sbr.rel (%p268) target = $region36
        $region35: #{encoder_traj.1} parent=11 // pred_region
          _
        $region36: #{encoder_traj.1} parent=11 // pred_fallthru
          _
        // Predicated region
        $region37: #{encoder_traj.1} parent=11 // pred_check
          %p271 = pneg %p191
        $region38: #{encoder_traj.1} parent=11 // pred_check_branch
          %273 = sbr.rel (%p271) target = $region40
        $region39: #{encoder_traj.1} parent=11 // pred_region
          _
        $region40: #{encoder_traj.1} parent=11 // pred_fallthru
          _
        // Predicated region
        $region41: #{encoder_traj.1} parent=11 // pred_check
          %p274 = pneg %p212
        $region42: #{encoder_traj.1} parent=11 // pred_check_branch
          %276 = sbr.rel (%p274) target = $region44
        $region43: #{encoder_traj.1} parent=11 // pred_region
          _
        $region44: #{encoder_traj.1} parent=11 // pred_fallthru
          _
      $region12: #{encoder_traj.1} parent=5 // pred_fallthru
        _
      %p277 = scmp.lt.s32.totalorder %s18, 2
      // Predicated region
      $region45: #{encoder_traj.1} parent=5 // pred_check
        %p278 = pneg %p277
      $region46: #{encoder_traj.1} parent=5 // pred_check_branch
        %280 = sbr.rel (%p278) target = $region48
      $region47: #{encoder_traj.1} parent=5 // pred_region
        // Predicated region
        $region49: #{encoder_traj.1} parent=47 // pred_check
          %p281 = pneg %p38
        $region50: #{encoder_traj.1} parent=47 // pred_check_branch
          %283 = sbr.rel (%p281) target = $region52
        $region51: #{encoder_traj.1} parent=47 // pred_region
          %s284 = smul.u32 56, %s18
          %p285 = scmp.lt.s32.totalorder %s284, 111
          %s286 = scalar_select %p285, %s284, 111
          %s287 = smul.addr %s286, 8
          %s288 = scalar_lea.vmem %s0, %s287
          %s289 = smul.u32 56, %s18
        $region52: #{encoder_traj.1} parent=47 // pred_fallthru
          _
      $region48: #{encoder_traj.1} parent=5 // pred_fallthru
        _
      %p290 = scmp.le.s32.totalorder 1, %s18
      %p291 = scmp.lt.s32.totalorder %s18, 3
      %p292 = pnand %p290, %p291
      %p293 = pneg %p292
      // Predicated region
      $region53: #{encoder_traj.1} parent=5 // pred_check
        _
      $region54: #{encoder_traj.1} parent=5 // pred_check_branch
        %295 = sbr.rel (%p292) target = $region56
      $region55: #{encoder_traj.1} parent=5 // pred_region
        %s296 = ssub.s32 %s18, 1
        %s297 = smul.u32 56, %s23
        %p298 = scmp.lt.s32.totalorder %s297, 111
        %s299 = scalar_select %p298, %s297, 111
        %s300 = smul.addr %s299, 8
        %s301 = scalar_lea.vmem %s0, %s300
        %p302 = pneg %p44
        %p303 = pneg %p41
        %p304 = pneg %p65
        %p305 = pneg %p62
        %p306 = pneg %p86
        %p307 = pneg %p83
        %p308 = pneg %p107
        %p309 = pneg %p104
        %p310 = pneg %p128
        %p311 = pneg %p125
        %p312 = pneg %p149
        %p313 = pneg %p146
        %p314 = pneg %p170
        %p315 = pneg %p167
        %p316 = pneg %p191
        %p317 = pneg %p188
        %p318 = pneg %p212
        %p319 = pneg %p209
        %p320 = pneg %p238
        %p321 = pneg %p235
        %s322 = sand.u32 %s225, 1
        %s323 = scalar_lea.sflag [#allocation3], %s322
        %s324 = sand.u32 %s225, 1
        %s325 = scalar_lea.vmem [#allocation2], %s324
        %s326 = smul.u32 56, %s23
        %p327 = scmp.lt.s32.totalorder %s326, 111
        %s328 = scalar_select %p327, %s326, 111
        %s329 = smul.addr %s328, 8
        %s330 = scalar_lea.vmem %s0, %s329
        %s331 = smul.u32 56, %s23
        %v332 = vld [vmem:[%s1] sm:$0xff]
        %v333 = vld [vmem:[%s1 + $0x8] sm:$0xff]
        %v334 = vld [vmem:[%s1 + $0x10] sm:$0xff]
        %v335 = vld [vmem:[%s1 + $0x18] sm:$0xff]
        %v336 = vld [vmem:[%s1 + $0x20] sm:$0xff]
        %v337 = vld [vmem:[%s1 + $0x28] sm:$0xff]
        %v338 = vld [vmem:[%s1 + $0x30] sm:$0xff]
        %v339 = vld [vmem:[%s1 + $0x38] sm:$0xff]
        %v340 = vld [vmem:[%s1 + $0x40] sm:$0xff]
        %v341 = vld [vmem:[%s1 + $0x48] sm:$0xff]
        %v342 = vld [vmem:[%s1 + $0x50] sm:$0xff]
        %v343 = vld [vmem:[%s1 + $0x58] sm:$0xff]
        %v344 = vld [vmem:[%s1 + $0x60] sm:$0xff]
        %v345 = vld [vmem:[%s1 + $0x68] sm:$0xff]
        %v346 = vld [vmem:[%s1 + $0x70] sm:$0xff]
        %v347 = vld [vmem:[%s1 + $0x78] sm:$0xff]
        %v348 = vld [vmem:[%s2] sm:$0x1]
        %v349 = vld [vmem:[%s3] sm:$0xff]
        %v350 = vld [vmem:[%s3 + $0x8] sm:$0xff]
        %v351 = vld [vmem:[%s3 + $0x10] sm:$0xff]
        %v352 = vld [vmem:[%s3 + $0x18] sm:$0xff]
        %v353 = vld [vmem:[%s3 + $0x20] sm:$0xff]
        %v354 = vld [vmem:[%s3 + $0x28] sm:$0xff]
        %v355 = vld [vmem:[%s3 + $0x30] sm:$0xff]
        %v356 = vld [vmem:[%s3 + $0x38] sm:$0xff]
        %v357 = vld [vmem:[%s3 + $0x40] sm:$0xff]
        %v358 = vld [vmem:[%s3 + $0x48] sm:$0xff]
        %v359 = vld [vmem:[%s3 + $0x50] sm:$0xff]
        %v360 = vld [vmem:[%s3 + $0x58] sm:$0xff]
        %v361 = vld [vmem:[%s3 + $0x60] sm:$0xff]
        %v362 = vld [vmem:[%s3 + $0x68] sm:$0xff]
        %v363 = vld [vmem:[%s3 + $0x70] sm:$0xff]
        %v364 = vld [vmem:[%s3 + $0x78] sm:$0xff]
        %v365 = vld [vmem:[%s3 + $0x80] sm:$0xff]
        %v366 = vld [vmem:[%s3 + $0x88] sm:$0xff]
        %v367 = vld [vmem:[%s3 + $0x90] sm:$0xff]
        %v368 = vld [vmem:[%s3 + $0x98] sm:$0xff]
        %v369 = vld [vmem:[%s3 + $0xa0] sm:$0xff]
        %v370 = vld [vmem:[%s3 + $0xa8] sm:$0xff]
        %v371 = vld [vmem:[%s3 + $0xb0] sm:$0xff]
        %v372 = vld [vmem:[%s3 + $0xb8] sm:$0xff]
        %v373 = vld [vmem:[%s3 + $0xc0] sm:$0xff]
        %v374 = vld [vmem:[%s3 + $0xc8] sm:$0xff]
        %v375 = vld [vmem:[%s3 + $0xd0] sm:$0xff]
        %v376 = vld [vmem:[%s3 + $0xd8] sm:$0xff]
        %v377 = vld [vmem:[%s3 + $0xe0] sm:$0xff]
        %v378 = vld [vmem:[%s3 + $0xe8] sm:$0xff]
        %v379 = vld [vmem:[%s3 + $0xf0] sm:$0xff]
        %v380 = vld [vmem:[%s3 + $0xf8] sm:$0xff]
        %v381 = vld [vmem:[%s3 + $0x100] sm:$0xff]
        %v382 = vld [vmem:[%s3 + $0x108] sm:$0xff]
        %v383 = vld [vmem:[%s3 + $0x110] sm:$0xff]
        %v384 = vld [vmem:[%s3 + $0x118] sm:$0xff]
        %v385 = vld [vmem:[%s3 + $0x120] sm:$0xff]
        %v386 = vld [vmem:[%s3 + $0x128] sm:$0xff]
        %v387 = vld [vmem:[%s3 + $0x130] sm:$0xff]
        %v388 = vld [vmem:[%s3 + $0x138] sm:$0xff]
        %v389 = vld [vmem:[%s3 + $0x140] sm:$0xff]
        %v390 = vld [vmem:[%s3 + $0x148] sm:$0xff]
        %v391 = vld [vmem:[%s3 + $0x150] sm:$0xff]
        %v392 = vld [vmem:[%s3 + $0x158] sm:$0xff]
        %v393 = vld [vmem:[%s3 + $0x160] sm:$0xff]
        %v394 = vld [vmem:[%s3 + $0x168] sm:$0xff]
        %v395 = vld [vmem:[%s3 + $0x170] sm:$0xff]
        %v396 = vld [vmem:[%s3 + $0x178] sm:$0xff]
        %v397 = vld [vmem:[%s3 + $0x180] sm:$0xff]
        %v398 = vld [vmem:[%s3 + $0x188] sm:$0xff]
        %v399 = vld [vmem:[%s3 + $0x190] sm:$0xff]
        %v400 = vld [vmem:[%s3 + $0x198] sm:$0xff]
        %v401 = vld [vmem:[%s3 + $0x1a0] sm:$0xff]
        %v402 = vld [vmem:[%s3 + $0x1a8] sm:$0xff]
        %v403 = vld [vmem:[%s3 + $0x1b0] sm:$0xff]
        %v404 = vld [vmem:[%s3 + $0x1b8] sm:$0xff]
        %v405 = vld [vmem:[%s3 + $0x1c0] sm:$0xff]
        %v406 = vld [vmem:[%s3 + $0x1c8] sm:$0xff]
        %v407 = vld [vmem:[%s3 + $0x1d0] sm:$0xff]
        %v408 = vld [vmem:[%s3 + $0x1d8] sm:$0xff]
        %v409 = vld [vmem:[%s3 + $0x1e0] sm:$0xff]
        %v410 = vld [vmem:[%s3 + $0x1e8] sm:$0xff]
        %v411 = vld [vmem:[%s3 + $0x1f0] sm:$0xff]
        %v412 = vld [vmem:[%s3 + $0x1f8] sm:$0xff]
        %v413 = vld [vmem:[%s4] sm:$0x1]
        %v414 = vld [vmem:[%s5] sm:$0xff]
        %v415 = vld [vmem:[%s5 + $0x8] sm:$0xff]
        %v416 = vld [vmem:[%s5 + $0x10] sm:$0xff]
        %v417 = vld [vmem:[%s5 + $0x18] sm:$0xff]
        %v418 = vld [vmem:[%s5 + $0x20] sm:$0xff]
        %v419 = vld [vmem:[%s5 + $0x28] sm:$0xff]
        %v420 = vld [vmem:[%s5 + $0x30] sm:$0xff]
        %v421 = vld [vmem:[%s5 + $0x38] sm:$0xff]
        %v422 = vld [vmem:[%s5 + $0x40] sm:$0xff]
        %v423 = vld [vmem:[%s5 + $0x48] sm:$0xff]
        %v424 = vld [vmem:[%s5 + $0x50] sm:$0xff]
        %v425 = vld [vmem:[%s5 + $0x58] sm:$0xff]
        %v426 = vld [vmem:[%s5 + $0x60] sm:$0xff]
        %v427 = vld [vmem:[%s5 + $0x68] sm:$0xff]
        %v428 = vld [vmem:[%s5 + $0x70] sm:$0xff]
        %v429 = vld [vmem:[%s5 + $0x78] sm:$0xff]
        %v430 = vld [vmem:[%s5 + $0x80] sm:$0xff]
        %v431 = vld [vmem:[%s5 + $0x88] sm:$0xff]
        %v432 = vld [vmem:[%s5 + $0x90] sm:$0xff]
        %v433 = vld [vmem:[%s5 + $0x98] sm:$0xff]
        %v434 = vld [vmem:[%s5 + $0xa0] sm:$0xff]
        %v435 = vld [vmem:[%s5 + $0xa8] sm:$0xff]
        %v436 = vld [vmem:[%s5 + $0xb0] sm:$0xff]
        %v437 = vld [vmem:[%s5 + $0xb8] sm:$0xff]
        %v438 = vld [vmem:[%s5 + $0xc0] sm:$0xff]
        %v439 = vld [vmem:[%s5 + $0xc8] sm:$0xff]
        %v440 = vld [vmem:[%s5 + $0xd0] sm:$0xff]
        %v441 = vld [vmem:[%s5 + $0xd8] sm:$0xff]
        %v442 = vld [vmem:[%s5 + $0xe0] sm:$0xff]
        %v443 = vld [vmem:[%s5 + $0xe8] sm:$0xff]
        %v444 = vld [vmem:[%s5 + $0xf0] sm:$0xff]
        %v445 = vld [vmem:[%s5 + $0xf8] sm:$0xff]
        %v446 = vld [vmem:[%s5 + $0x100] sm:$0xff]
        %v447 = vld [vmem:[%s5 + $0x108] sm:$0xff]
        %v448 = vld [vmem:[%s5 + $0x110] sm:$0xff]
        %v449 = vld [vmem:[%s5 + $0x118] sm:$0xff]
        %v450 = vld [vmem:[%s5 + $0x120] sm:$0xff]
        %v451 = vld [vmem:[%s5 + $0x128] sm:$0xff]
        %v452 = vld [vmem:[%s5 + $0x130] sm:$0xff]
        %v453 = vld [vmem:[%s5 + $0x138] sm:$0xff]
        %v454 = vld [vmem:[%s5 + $0x140] sm:$0xff]
        %v455 = vld [vmem:[%s5 + $0x148] sm:$0xff]
        %v456 = vld [vmem:[%s5 + $0x150] sm:$0xff]
        %v457 = vld [vmem:[%s5 + $0x158] sm:$0xff]
        %v458 = vld [vmem:[%s5 + $0x160] sm:$0xff]
        %v459 = vld [vmem:[%s5 + $0x168] sm:$0xff]
        %v460 = vld [vmem:[%s5 + $0x170] sm:$0xff]
        %v461 = vld [vmem:[%s5 + $0x178] sm:$0xff]
        %v462 = vld [vmem:[%s5 + $0x180] sm:$0xff]
        %v463 = vld [vmem:[%s5 + $0x188] sm:$0xff]
        %v464 = vld [vmem:[%s5 + $0x190] sm:$0xff]
        %v465 = vld [vmem:[%s5 + $0x198] sm:$0xff]
        %v466 = vld [vmem:[%s5 + $0x1a0] sm:$0xff]
        %v467 = vld [vmem:[%s5 + $0x1a8] sm:$0xff]
        %v468 = vld [vmem:[%s5 + $0x1b0] sm:$0xff]
        %v469 = vld [vmem:[%s5 + $0x1b8] sm:$0xff]
        %v470 = vld [vmem:[%s5 + $0x1c0] sm:$0xff]
        %v471 = vld [vmem:[%s5 + $0x1c8] sm:$0xff]
        %v472 = vld [vmem:[%s5 + $0x1d0] sm:$0xff]
        %v473 = vld [vmem:[%s5 + $0x1d8] sm:$0xff]
        %v474 = vld [vmem:[%s5 + $0x1e0] sm:$0xff]
        %v475 = vld [vmem:[%s5 + $0x1e8] sm:$0xff]
        %v476 = vld [vmem:[%s5 + $0x1f0] sm:$0xff]
        %v477 = vld [vmem:[%s5 + $0x1f8] sm:$0xff]
        %v478 = vld [vmem:[%s5 + $0x200] sm:$0xff]
        %v479 = vld [vmem:[%s5 + $0x208] sm:$0xff]
        %v480 = vld [vmem:[%s5 + $0x210] sm:$0xff]
        %v481 = vld [vmem:[%s5 + $0x218] sm:$0xff]
        %v482 = vld [vmem:[%s5 + $0x220] sm:$0xff]
        %v483 = vld [vmem:[%s5 + $0x228] sm:$0xff]
        %v484 = vld [vmem:[%s5 + $0x230] sm:$0xff]
        %v485 = vld [vmem:[%s5 + $0x238] sm:$0xff]
        %v486 = vld [vmem:[%s6] sm:$0x1]
        %v487 = vld [vmem:[%s7] sm:$0xff]
        %v488 = vld [vmem:[%s7 + $0x8] sm:$0xff]
        %v489 = vld [vmem:[%s7 + $0x10] sm:$0xff]
        %v490 = vld [vmem:[%s7 + $0x18] sm:$0xff]
        %v491 = vld [vmem:[%s7 + $0x20] sm:$0xff]
        %v492 = vld [vmem:[%s7 + $0x28] sm:$0xff]
        %v493 = vld [vmem:[%s7 + $0x30] sm:$0xff]
        %v494 = vld [vmem:[%s7 + $0x38] sm:$0xff]
        %v495 = vld [vmem:[%s8] sm:$0x1]
        %v496 = vld [vmem:[%s330] sm:$0xff]
        %v497 = vld [vmem:[%s330 + $0x8] sm:$0xff]
        %v498 = vld [vmem:[%s330 + $0x10] sm:$0xff]
        %v499 = vld [vmem:[%s330 + $0x18] sm:$0xff]
        %v500 = vld [vmem:[%s330 + $0x20] sm:$0xff]
        %v501 = vld [vmem:[%s330 + $0x28] sm:$0xff]
        %v502 = vld [vmem:[%s330 + $0x30] sm:$0xff]
        %v503 = vld [vmem:[%s330 + $0x38] sm:$0xff]
        %v504 = vld [vmem:[%s330 + $0x40] sm:$0xff]
        %v505 = vld [vmem:[%s330 + $0x48] sm:$0xff]
        %v506 = vld [vmem:[%s330 + $0x50] sm:$0xff]
        %v507 = vld [vmem:[%s330 + $0x58] sm:$0xff]
        %v508 = vld [vmem:[%s330 + $0x60] sm:$0xff]
        %v509 = vld [vmem:[%s330 + $0x68] sm:$0xff]
        %v510 = vld [vmem:[%s330 + $0x70] sm:$0xff]
        %v511 = vld [vmem:[%s330 + $0x78] sm:$0xff]
        %v512 = vld [vmem:[%s330 + $0x80] sm:$0xff]
        %v513 = vld [vmem:[%s330 + $0x88] sm:$0xff]
        %v514 = vld [vmem:[%s330 + $0x90] sm:$0xff]
        %v515 = vld [vmem:[%s330 + $0x98] sm:$0xff]
        %v516 = vld [vmem:[%s330 + $0xa0] sm:$0xff]
        %v517 = vld [vmem:[%s330 + $0xa8] sm:$0xff]
        %v518 = vld [vmem:[%s330 + $0xb0] sm:$0xff]
        %v519 = vld [vmem:[%s330 + $0xb8] sm:$0xff]
        %v520 = vld [vmem:[%s330 + $0xc0] sm:$0xff]
        %v521 = vld [vmem:[%s330 + $0xc8] sm:$0xff]
        %v522 = vld [vmem:[%s330 + $0xd0] sm:$0xff]
        %v523 = vld [vmem:[%s330 + $0xd8] sm:$0xff]
        %v524 = vld [vmem:[%s330 + $0xe0] sm:$0xff]
        %v525 = vld [vmem:[%s330 + $0xe8] sm:$0xff]
        %v526 = vld [vmem:[%s330 + $0xf0] sm:$0xff]
        %v527 = vld [vmem:[%s330 + $0xf8] sm:$0xff]
        %v528 = vld [vmem:[%s330 + $0x100] sm:$0xff]
        %v529 = vld [vmem:[%s330 + $0x108] sm:$0xff]
        %v530 = vld [vmem:[%s330 + $0x110] sm:$0xff]
        %v531 = vld [vmem:[%s330 + $0x118] sm:$0xff]
        %v532 = vld [vmem:[%s330 + $0x120] sm:$0xff]
        %v533 = vld [vmem:[%s330 + $0x128] sm:$0xff]
        %v534 = vld [vmem:[%s330 + $0x130] sm:$0xff]
        %v535 = vld [vmem:[%s330 + $0x138] sm:$0xff]
        %v536 = vld [vmem:[%s330 + $0x140] sm:$0xff]
        %v537 = vld [vmem:[%s330 + $0x148] sm:$0xff]
        %v538 = vld [vmem:[%s330 + $0x150] sm:$0xff]
        %v539 = vld [vmem:[%s330 + $0x158] sm:$0xff]
        %v540 = vld [vmem:[%s330 + $0x160] sm:$0xff]
        %v541 = vld [vmem:[%s330 + $0x168] sm:$0xff]
        %v542 = vld [vmem:[%s330 + $0x170] sm:$0xff]
        %v543 = vld [vmem:[%s330 + $0x178] sm:$0xff]
        %v544 = vld [vmem:[%s330 + $0x180] sm:$0xff]
        %v545 = vld [vmem:[%s330 + $0x188] sm:$0xff]
        %v546 = vld [vmem:[%s330 + $0x190] sm:$0xff]
        %v547 = vld [vmem:[%s330 + $0x198] sm:$0xff]
        %v548 = vld [vmem:[%s330 + $0x1a0] sm:$0xff]
        %v549 = vld [vmem:[%s330 + $0x1a8] sm:$0xff]
        %v550 = vld [vmem:[%s330 + $0x1b0] sm:$0xff]
        %v551 = vld [vmem:[%s330 + $0x1b8] sm:$0xff]
        %v553 = vlaneseq
        %v554 = vshrl.u32 %v553, 7
        %v555 = vsub.s32 0, %v554
        %v556 = vrot.slane %v348, %v555
        %558 = vmatprep.subr.mxu0 0.0
        %559 = vmatpush1.msra.mxu0 %v332
        %560 = vmatprep.subr.mxu0 0.0
        %561 = vmatpush1.msra.mxu0 %v333
        %562 = vmatprep.subr.mxu0 0.0
        %563 = vmatpush1.msra.mxu0 %v334
        %564 = vmatprep.subr.mxu0 0.0
        %565 = vmatpush1.msra.mxu0 %v335
        %566 = vmatprep.subr.mxu0 0.0
        %567 = vmatpush1.msra.mxu0 %v336
        %568 = vmatprep.subr.mxu0 0.0
        %569 = vmatpush1.msra.mxu0 %v337
        %570 = vmatprep.subr.mxu0 0.0
        %571 = vmatpush1.msra.mxu0 %v338
        %572 = vmatprep.subr.mxu0 0.0
        %573 = vmatpush1.msra.mxu0 %v339
        %574 = vmatprep.subr.mxu0 0.0
        %575 = vmatpush1.msra.mxu0 %v340
        %576 = vmatprep.subr.mxu0 0.0
        %577 = vmatpush1.msra.mxu0 %v341
        %578 = vmatprep.subr.mxu0 0.0
        %579 = vmatpush1.msra.mxu0 %v342
        %580 = vmatprep.subr.mxu0 0.0
        %581 = vmatpush1.msra.mxu0 %v343
        %582 = vmatprep.subr.mxu0 0.0
        %583 = vmatpush1.msra.mxu0 %v344
        %584 = vmatprep.subr.mxu0 0.0
        %585 = vmatpush1.msra.mxu0 %v345
        %586 = vmatprep.subr.mxu0 0.0
        %587 = vmatpush1.msra.mxu0 %v346
        %588 = vmatprep.subr.mxu0 0.0
        %589 = vmatpush1.msra.mxu0 %v347
        %590 = vmatprep.subr.mxu0 0.0
        %591 = vmatpush1.msra.mxu0 0.0
        %592 = vmatprep.subr.mxu0 0.0
        %593 = vmatpush1.msra.mxu0 0.0
        %594 = vmatprep.subr.mxu0 0.0
        %595 = vmatpush1.msra.mxu0 0.0
        %596 = vmatprep.subr.mxu0 0.0
        %597 = vmatpush1.msra.mxu0 0.0
        %598 = vmatprep.subr.mxu0 0.0
        %599 = vmatpush1.msra.mxu0 0.0
        %600 = vmatprep.subr.mxu0 0.0
        %601 = vmatpush1.msra.mxu0 0.0
        %602 = vmatprep.subr.mxu0 0.0
        %603 = vmatpush1.msra.mxu0 0.0
        %604 = vmatprep.subr.mxu0 0.0
        %605 = vmatpush1.msra.mxu0 0.0
        %606 = vmatprep.subr.mxu0 0.0
        %607 = vmatpush1.msra.mxu0 0.0
        %608 = vmatprep.subr.mxu0 0.0
        %609 = vmatpush1.msra.mxu0 0.0
        %610 = vmatprep.subr.mxu0 0.0
        %611 = vmatpush1.msra.mxu0 0.0
        %612 = vmatprep.subr.mxu0 0.0
        %613 = vmatpush1.msra.mxu0 0.0
        %614 = vmatprep.subr.mxu0 0.0
        %615 = vmatpush1.msra.mxu0 0.0
        %616 = vmatprep.subr.mxu0 0.0
        %617 = vmatpush1.msra.mxu0 0.0
        %618 = vmatprep.subr.mxu0 0.0
        %619 = vmatpush1.msra.mxu0 0.0
        %620 = vmatprep.subr.mxu0 0.0
        %621 = vmatpush1.msra.mxu0 0.0
        %622 = vmatprep.mubr.f32.mxu0 0.0
        %623 = vmatmul.mubr.f32.gmra.mrb[0].mxu0 %v496
        %v624 = vpop.f32.mrb[0].mxu0
        %v625 = vadd.f32 %v556, %v624
        %v626 = vpop.f32.mrb[0].mxu0
        %627 = vmatprep.mubr.f32.mxu0 0.0
        %628 = vmatmul.mubr.f32.gmra.mrb[0].mxu0 %v497
        %v629 = vpop.f32.mrb[0].mxu0
        %v630 = vadd.f32 %v556, %v629
        %v631 = vpop.f32.mrb[0].mxu0
        %632 = vmatprep.mubr.f32.mxu0 0.0
        %633 = vmatmul.mubr.f32.gmra.mrb[0].mxu0 %v498
        %v634 = vpop.f32.mrb[0].mxu0
        %v635 = vadd.f32 %v556, %v634
        %v636 = vpop.f32.mrb[0].mxu0
        %637 = vmatprep.mubr.f32.mxu0 0.0
        %638 = vmatmul.mubr.f32.gmra.mrb[0].mxu0 %v499
        %v639 = vpop.f32.mrb[0].mxu0
        %v640 = vadd.f32 %v556, %v639
        %v641 = vpop.f32.mrb[0].mxu0
        %642 = vmatprep.mubr.f32.mxu0 0.0
        %643 = vmatmul.mubr.f32.gmra.mrb[0].mxu0 %v500
        %v644 = vpop.f32.mrb[0].mxu0
        %v645 = vadd.f32 %v556, %v644
        %v646 = vpop.f32.mrb[0].mxu0
        %647 = vmatprep.mubr.f32.mxu0 0.0
        %648 = vmatmul.mubr.f32.gmra.mrb[0].mxu0 %v501
        %v649 = vpop.f32.mrb[0].mxu0
        %v650 = vadd.f32 %v556, %v649
        %v651 = vpop.f32.mrb[0].mxu0
        %652 = vmatprep.mubr.f32.mxu0 0.0
        %653 = vmatmul.mubr.f32.gmra.mrb[0].mxu0 %v502
        %v654 = vpop.f32.mrb[0].mxu0
        %v655 = vadd.f32 %v556, %v654
        %v656 = vpop.f32.mrb[0].mxu0
        %657 = vmatprep.mubr.f32.mxu0 0.0
        %658 = vmatmul.mubr.f32.gmra.mrb[0].mxu0 %v503
        %v659 = vpop.f32.mrb[0].mxu0
        %v660 = vadd.f32 %v556, %v659
        %v661 = vpop.f32.mrb[0].mxu0
        %662 = vmatprep.mubr.f32.mxu0 0.0
        %663 = vmatmul.mubr.f32.gmra.mrb[0].mxu0 %v504
        %v664 = vpop.f32.mrb[0].mxu0
        %v665 = vadd.f32 %v556, %v664
        %v666 = vpop.f32.mrb[0].mxu0
        %667 = vmatprep.mubr.f32.mxu0 0.0
        %668 = vmatmul.mubr.f32.gmra.mrb[0].mxu0 %v505
        %v669 = vpop.f32.mrb[0].mxu0
        %v670 = vadd.f32 %v556, %v669
        %v671 = vpop.f32.mrb[0].mxu0
        %672 = vmatprep.mubr.f32.mxu0 0.0
        %673 = vmatmul.mubr.f32.gmra.mrb[0].mxu0 %v506
        %v674 = vpop.f32.mrb[0].mxu0
        %v675 = vadd.f32 %v556, %v674
        %v676 = vpop.f32.mrb[0].mxu0
        %677 = vmatprep.mubr.f32.mxu0 0.0
        %678 = vmatmul.mubr.f32.gmra.mrb[0].mxu0 %v507
        %v679 = vpop.f32.mrb[0].mxu0
        %v680 = vadd.f32 %v556, %v679
        %v681 = vpop.f32.mrb[0].mxu0
        %682 = vmatprep.mubr.f32.mxu0 0.0
        %683 = vmatmul.mubr.f32.gmra.mrb[0].mxu0 %v508
        %v684 = vpop.f32.mrb[0].mxu0
        %v685 = vadd.f32 %v556, %v684
        %v686 = vpop.f32.mrb[0].mxu0
        %687 = vmatprep.mubr.f32.mxu0 0.0
        %688 = vmatmul.mubr.f32.gmra.mrb[0].mxu0 %v509
        %v689 = vpop.f32.mrb[0].mxu0
        %v690 = vadd.f32 %v556, %v689
        %v691 = vpop.f32.mrb[0].mxu0
        %692 = vmatprep.mubr.f32.mxu0 0.0
        %693 = vmatmul.mubr.f32.gmra.mrb[0].mxu0 %v510
        %v694 = vpop.f32.mrb[0].mxu0
        %v695 = vadd.f32 %v556, %v694
        %v696 = vpop.f32.mrb[0].mxu0
        %697 = vmatprep.mubr.f32.mxu0 0.0
        %698 = vmatmul.mubr.f32.gmra.mrb[0].mxu0 %v511
        %v699 = vpop.f32.mrb[0].mxu0
        %v700 = vadd.f32 %v556, %v699
        %v701 = vpop.f32.mrb[0].mxu0
        %702 = vmatprep.mubr.f32.mxu0 0.0
        %703 = vmatmul.mubr.f32.gmra.mrb[0].mxu0 %v512
        %v704 = vpop.f32.mrb[0].mxu0
        %v705 = vadd.f32 %v556, %v704
        %v706 = vpop.f32.mrb[0].mxu0
        %707 = vmatprep.mubr.f32.mxu0 0.0
        %708 = vmatmul.mubr.f32.gmra.mrb[0].mxu0 %v513
        %v709 = vpop.f32.mrb[0].mxu0
        %v710 = vadd.f32 %v556, %v709
        %v711 = vpop.f32.mrb[0].mxu0
        %712 = vmatprep.mubr.f32.mxu0 0.0
        %713 = vmatmul.mubr.f32.gmra.mrb[0].mxu0 %v514
        %v714 = vpop.f32.mrb[0].mxu0
        %v715 = vadd.f32 %v556, %v714
        %v716 = vpop.f32.mrb[0].mxu0
        %717 = vmatprep.mubr.f32.mxu0 0.0
        %718 = vmatmul.mubr.f32.gmra.mrb[0].mxu0 %v515
        %v719 = vpop.f32.mrb[0].mxu0
        %v720 = vadd.f32 %v556, %v719
        %v721 = vpop.f32.mrb[0].mxu0
        %722 = vmatprep.mubr.f32.mxu0 0.0
        %723 = vmatmul.mubr.f32.gmra.mrb[0].mxu0 %v516
        %v724 = vpop.f32.mrb[0].mxu0
        %v725 = vadd.f32 %v556, %v724
        %v726 = vpop.f32.mrb[0].mxu0
        %727 = vmatprep.mubr.f32.mxu0 0.0
        %728 = vmatmul.mubr.f32.gmra.mrb[0].mxu0 %v517
        %v729 = vpop.f32.mrb[0].mxu0
        %v730 = vadd.f32 %v556, %v729
        %v731 = vpop.f32.mrb[0].mxu0
        %732 = vmatprep.mubr.f32.mxu0 0.0
        %733 = vmatmul.mubr.f32.gmra.mrb[0].mxu0 %v518
        %v734 = vpop.f32.mrb[0].mxu0
        %v735 = vadd.f32 %v556, %v734
        %v736 = vpop.f32.mrb[0].mxu0
        %737 = vmatprep.mubr.f32.mxu0 0.0
        %738 = vmatmul.mubr.f32.gmra.mrb[0].mxu0 %v519
        %v739 = vpop.f32.mrb[0].mxu0
        %v740 = vadd.f32 %v556, %v739
        %v741 = vpop.f32.mrb[0].mxu0
        %742 = vmatprep.mubr.f32.mxu0 0.0
        %743 = vmatmul.mubr.f32.gmra.mrb[0].mxu0 %v520
        %v744 = vpop.f32.mrb[0].mxu0
        %v745 = vadd.f32 %v556, %v744
        %v746 = vpop.f32.mrb[0].mxu0
        %747 = vmatprep.mubr.f32.mxu0 0.0
        %748 = vmatmul.mubr.f32.gmra.mrb[0].mxu0 %v521
        %v749 = vpop.f32.mrb[0].mxu0
        %v750 = vadd.f32 %v556, %v749
        %v751 = vpop.f32.mrb[0].mxu0
        %752 = vmatprep.mubr.f32.mxu0 0.0
        %753 = vmatmul.mubr.f32.gmra.mrb[0].mxu0 %v522
        %v754 = vpop.f32.mrb[0].mxu0
        %v755 = vadd.f32 %v556, %v754
        %v756 = vpop.f32.mrb[0].mxu0
        %757 = vmatprep.mubr.f32.mxu0 0.0
        %758 = vmatmul.mubr.f32.gmra.mrb[0].mxu0 %v523
        %v759 = vpop.f32.mrb[0].mxu0
        %v760 = vadd.f32 %v556, %v759
        %v761 = vpop.f32.mrb[0].mxu0
        %762 = vmatprep.mubr.f32.mxu0 0.0
        %763 = vmatmul.mubr.f32.gmra.mrb[0].mxu0 %v524
        %v764 = vpop.f32.mrb[0].mxu0
        %v765 = vadd.f32 %v556, %v764
        %v766 = vpop.f32.mrb[0].mxu0
        %767 = vmatprep.mubr.f32.mxu0 0.0
        %768 = vmatmul.mubr.f32.gmra.mrb[0].mxu0 %v525
        %v769 = vpop.f32.mrb[0].mxu0
        %v770 = vadd.f32 %v556, %v769
        %v771 = vpop.f32.mrb[0].mxu0
        %772 = vmatprep.mubr.f32.mxu0 0.0
        %773 = vmatmul.mubr.f32.gmra.mrb[0].mxu0 %v526
        %v774 = vpop.f32.mrb[0].mxu0
        %v775 = vadd.f32 %v556, %v774
        %v776 = vpop.f32.mrb[0].mxu0
        %777 = vmatprep.mubr.f32.mxu0 0.0
        %778 = vmatmul.mubr.f32.gmra.mrb[0].mxu0 %v527
        %v779 = vpop.f32.mrb[0].mxu0
        %v780 = vadd.f32 %v556, %v779
        %v781 = vpop.f32.mrb[0].mxu0
        %782 = vmatprep.mubr.f32.mxu0 0.0
        %783 = vmatmul.mubr.f32.gmra.mrb[0].mxu0 %v528
        %v784 = vpop.f32.mrb[0].mxu0
        %v785 = vadd.f32 %v556, %v784
        %v786 = vpop.f32.mrb[0].mxu0
        %787 = vmatprep.mubr.f32.mxu0 0.0
        %788 = vmatmul.mubr.f32.gmra.mrb[0].mxu0 %v529
        %v789 = vpop.f32.mrb[0].mxu0
        %v790 = vadd.f32 %v556, %v789
        %v791 = vpop.f32.mrb[0].mxu0
        %792 = vmatprep.mubr.f32.mxu0 0.0
        %793 = vmatmul.mubr.f32.gmra.mrb[0].mxu0 %v530
        %v794 = vpop.f32.mrb[0].mxu0
        %v795 = vadd.f32 %v556, %v794
        %v796 = vpop.f32.mrb[0].mxu0
        %797 = vmatprep.mubr.f32.mxu0 0.0
        %798 = vmatmul.mubr.f32.gmra.mrb[0].mxu0 %v531
        %v799 = vpop.f32.mrb[0].mxu0
        %v800 = vadd.f32 %v556, %v799
        %v801 = vpop.f32.mrb[0].mxu0
        %802 = vmatprep.mubr.f32.mxu0 0.0
        %803 = vmatmul.mubr.f32.gmra.mrb[0].mxu0 %v532
        %v804 = vpop.f32.mrb[0].mxu0
        %v805 = vadd.f32 %v556, %v804
        %v806 = vpop.f32.mrb[0].mxu0
        %807 = vmatprep.mubr.f32.mxu0 0.0
        %808 = vmatmul.mubr.f32.gmra.mrb[0].mxu0 %v533
        %v809 = vpop.f32.mrb[0].mxu0
        %v810 = vadd.f32 %v556, %v809
        %v811 = vpop.f32.mrb[0].mxu0
        %812 = vmatprep.mubr.f32.mxu0 0.0
        %813 = vmatmul.mubr.f32.gmra.mrb[0].mxu0 %v534
        %v814 = vpop.f32.mrb[0].mxu0
        %v815 = vadd.f32 %v556, %v814
        %v816 = vpop.f32.mrb[0].mxu0
        %817 = vmatprep.mubr.f32.mxu0 0.0
        %818 = vmatmul.mubr.f32.gmra.mrb[0].mxu0 %v535
        %v819 = vpop.f32.mrb[0].mxu0
        %v820 = vadd.f32 %v556, %v819
        %v821 = vpop.f32.mrb[0].mxu0
        %822 = vmatprep.mubr.f32.mxu0 0.0
        %823 = vmatmul.mubr.f32.gmra.mrb[0].mxu0 %v536
        %v824 = vpop.f32.mrb[0].mxu0
        %v825 = vadd.f32 %v556, %v824
        %v826 = vpop.f32.mrb[0].mxu0
        %827 = vmatprep.mubr.f32.mxu0 0.0
        %828 = vmatmul.mubr.f32.gmra.mrb[0].mxu0 %v537
        %v829 = vpop.f32.mrb[0].mxu0
        %v830 = vadd.f32 %v556, %v829
        %v831 = vpop.f32.mrb[0].mxu0
        %832 = vmatprep.mubr.f32.mxu0 0.0
        %833 = vmatmul.mubr.f32.gmra.mrb[0].mxu0 %v538
        %v834 = vpop.f32.mrb[0].mxu0
        %v835 = vadd.f32 %v556, %v834
        %v836 = vpop.f32.mrb[0].mxu0
        %837 = vmatprep.mubr.f32.mxu0 0.0
        %838 = vmatmul.mubr.f32.gmra.mrb[0].mxu0 %v539
        %v839 = vpop.f32.mrb[0].mxu0
        %v840 = vadd.f32 %v556, %v839
        %v841 = vpop.f32.mrb[0].mxu0
        %842 = vmatprep.mubr.f32.mxu0 0.0
        %843 = vmatmul.mubr.f32.gmra.mrb[0].mxu0 %v540
        %v844 = vpop.f32.mrb[0].mxu0
        %v845 = vadd.f32 %v556, %v844
        %v846 = vpop.f32.mrb[0].mxu0
        %847 = vmatprep.mubr.f32.mxu0 0.0
        %848 = vmatmul.mubr.f32.gmra.mrb[0].mxu0 %v541
        %v849 = vpop.f32.mrb[0].mxu0
        %v850 = vadd.f32 %v556, %v849
        %v851 = vpop.f32.mrb[0].mxu0
        %852 = vmatprep.mubr.f32.mxu0 0.0
        %853 = vmatmul.mubr.f32.gmra.mrb[0].mxu0 %v542
        %v854 = vpop.f32.mrb[0].mxu0
        %v855 = vadd.f32 %v556, %v854
        %v856 = vpop.f32.mrb[0].mxu0
        %857 = vmatprep.mubr.f32.mxu0 0.0
        %858 = vmatmul.mubr.f32.gmra.mrb[0].mxu0 %v543
        %v859 = vpop.f32.mrb[0].mxu0
        %v860 = vadd.f32 %v556, %v859
        %v861 = vpop.f32.mrb[0].mxu0
        %862 = vmatprep.mubr.f32.mxu0 0.0
        %863 = vmatmul.mubr.f32.gmra.mrb[0].mxu0 %v544
        %v864 = vpop.f32.mrb[0].mxu0
        %v865 = vadd.f32 %v556, %v864
        %v866 = vpop.f32.mrb[0].mxu0
        %867 = vmatprep.mubr.f32.mxu0 0.0
        %868 = vmatmul.mubr.f32.gmra.mrb[0].mxu0 %v545
        %v869 = vpop.f32.mrb[0].mxu0
        %v870 = vadd.f32 %v556, %v869
        %v871 = vpop.f32.mrb[0].mxu0
        %872 = vmatprep.mubr.f32.mxu0 0.0
        %873 = vmatmul.mubr.f32.gmra.mrb[0].mxu0 %v546
        %v874 = vpop.f32.mrb[0].mxu0
        %v875 = vadd.f32 %v556, %v874
        %v876 = vpop.f32.mrb[0].mxu0
        %877 = vmatprep.mubr.f32.mxu0 0.0
        %878 = vmatmul.mubr.f32.gmra.mrb[0].mxu0 %v547
        %v879 = vpop.f32.mrb[0].mxu0
        %v880 = vadd.f32 %v556, %v879
        %v881 = vpop.f32.mrb[0].mxu0
        %882 = vmatprep.mubr.f32.mxu0 0.0
        %883 = vmatmul.mubr.f32.gmra.mrb[0].mxu0 %v548
        %v884 = vpop.f32.mrb[0].mxu0
        %v885 = vadd.f32 %v556, %v884
        %v886 = vpop.f32.mrb[0].mxu0
        %887 = vmatprep.mubr.f32.mxu0 0.0
        %888 = vmatmul.mubr.f32.gmra.mrb[0].mxu0 %v549
        %v889 = vpop.f32.mrb[0].mxu0
        %v890 = vadd.f32 %v556, %v889
        %v891 = vpop.f32.mrb[0].mxu0
        %892 = vmatprep.mubr.f32.mxu0 0.0
        %893 = vmatmul.mubr.f32.gmra.mrb[0].mxu0 %v550
        %v894 = vpop.f32.mrb[0].mxu0
        %v895 = vadd.f32 %v556, %v894
        %v896 = vpop.f32.mrb[0].mxu0
        %897 = vmatprep.mubr.f32.mxu0 0.0
        %898 = vmatmul.mubr.f32.gmra.mrb[0].mxu0 %v551
        %v899 = vpop.f32.mrb[0].mxu0
        %v900 = vadd.f32 %v556, %v899
        %v901 = vpop.f32.mrb[0].mxu0
        %902 = vdwg.mxu0
        %v903 = vmax.f32 %v625, 0.0
        %v904 = vmax.f32 %v630, 0.0
        %v905 = vmax.f32 %v635, 0.0
        %v906 = vmax.f32 %v640, 0.0
        %v907 = vmax.f32 %v645, 0.0
        %v908 = vmax.f32 %v650, 0.0
        %v909 = vmax.f32 %v655, 0.0
        %v910 = vmax.f32 %v660, 0.0
        %v911 = vmax.f32 %v665, 0.0
        %v912 = vmax.f32 %v670, 0.0
        %v913 = vmax.f32 %v675, 0.0
        %v914 = vmax.f32 %v680, 0.0
        %v915 = vmax.f32 %v685, 0.0
        %v916 = vmax.f32 %v690, 0.0
        %v917 = vmax.f32 %v695, 0.0
        %v918 = vmax.f32 %v700, 0.0
        %v919 = vmax.f32 %v705, 0.0
        %v920 = vmax.f32 %v710, 0.0
        %v921 = vmax.f32 %v715, 0.0
        %v922 = vmax.f32 %v720, 0.0
        %v923 = vmax.f32 %v725, 0.0
        %v924 = vmax.f32 %v730, 0.0
        %v925 = vmax.f32 %v735, 0.0
        %v926 = vmax.f32 %v740, 0.0
        %v927 = vmax.f32 %v745, 0.0
        %v928 = vmax.f32 %v750, 0.0
        %v929 = vmax.f32 %v755, 0.0
        %v930 = vmax.f32 %v760, 0.0
        %v931 = vmax.f32 %v765, 0.0
        %v932 = vmax.f32 %v770, 0.0
        %v933 = vmax.f32 %v775, 0.0
        %v934 = vmax.f32 %v780, 0.0
        %v935 = vmax.f32 %v785, 0.0
        %v936 = vmax.f32 %v790, 0.0
        %v937 = vmax.f32 %v795, 0.0
        %v938 = vmax.f32 %v800, 0.0
        %v939 = vmax.f32 %v805, 0.0
        %v940 = vmax.f32 %v810, 0.0
        %v941 = vmax.f32 %v815, 0.0
        %v942 = vmax.f32 %v820, 0.0
        %v943 = vmax.f32 %v825, 0.0
        %v944 = vmax.f32 %v830, 0.0
        %v945 = vmax.f32 %v835, 0.0
        %v946 = vmax.f32 %v840, 0.0
        %v947 = vmax.f32 %v845, 0.0
        %v948 = vmax.f32 %v850, 0.0
        %v949 = vmax.f32 %v855, 0.0
        %v950 = vmax.f32 %v860, 0.0
        %v951 = vmax.f32 %v865, 0.0
        %v952 = vmax.f32 %v870, 0.0
        %v953 = vmax.f32 %v875, 0.0
        %v954 = vmax.f32 %v880, 0.0
        %v955 = vmax.f32 %v885, 0.0
        %v956 = vmax.f32 %v890, 0.0
        %v957 = vmax.f32 %v895, 0.0
        %v958 = vmax.f32 %v900, 0.0
        %973 = vrot.lane.b32.xlu0 %v917, 32
        %v974 = vpop.permute.xlu0 %973
        %975 = vrot.lane.b32.xlu0 %v918, 32
        %v976 = vpop.permute.xlu0 %975
        %977 = vrot.lane.b32.xlu0 %v919, 32
        %v978 = vpop.permute.xlu0 %977
        %979 = vrot.lane.b32.xlu0 %v920, 32
        %v980 = vpop.permute.xlu0 %979
        %981 = vrot.lane.b32.xlu0 %v921, 32
        %v982 = vpop.permute.xlu0 %981
        %983 = vrot.lane.b32.xlu0 %v922, 32
        %v984 = vpop.permute.xlu0 %983
        %985 = vrot.lane.b32.xlu0 %v923, 32
        %v986 = vpop.permute.xlu0 %985
        %987 = vrot.lane.b32.xlu0 %v924, 32
        %v988 = vpop.permute.xlu0 %987
        %989 = vrot.lane.b32.xlu0 %v925, 32
        %v990 = vpop.permute.xlu0 %989
        %991 = vrot.lane.b32.xlu0 %v926, 32
        %v992 = vpop.permute.xlu0 %991
        %993 = vrot.lane.b32.xlu0 %v927, 32
        %v994 = vpop.permute.xlu0 %993
        %995 = vrot.lane.b32.xlu0 %v928, 32
        %v996 = vpop.permute.xlu0 %995
        %997 = vrot.lane.b32.xlu0 %v929, 32
        %v998 = vpop.permute.xlu0 %997
        %999 = vrot.lane.b32.xlu0 %v930, 32
        %v1000 = vpop.permute.xlu0 %999
        %1029 = vrot.lane.b32.xlu0 %v931, 64
        %v1030 = vpop.permute.xlu0 %1029
        %1031 = vrot.lane.b32.xlu0 %v932, 64
        %v1032 = vpop.permute.xlu0 %1031
        %1033 = vrot.lane.b32.xlu0 %v933, 64
        %v1034 = vpop.permute.xlu0 %1033
        %1035 = vrot.lane.b32.xlu0 %v934, 64
        %v1036 = vpop.permute.xlu0 %1035
        %1037 = vrot.lane.b32.xlu0 %v935, 64
        %v1038 = vpop.permute.xlu0 %1037
        %1039 = vrot.lane.b32.xlu0 %v936, 64
        %v1040 = vpop.permute.xlu0 %1039
        %1041 = vrot.lane.b32.xlu0 %v937, 64
        %v1042 = vpop.permute.xlu0 %1041
        %1043 = vrot.lane.b32.xlu0 %v938, 64
        %v1044 = vpop.permute.xlu0 %1043
        %1045 = vrot.lane.b32.xlu0 %v939, 64
        %v1046 = vpop.permute.xlu0 %1045
        %1047 = vrot.lane.b32.xlu0 %v940, 64
        %v1048 = vpop.permute.xlu0 %1047
        %1049 = vrot.lane.b32.xlu0 %v941, 64
        %v1050 = vpop.permute.xlu0 %1049
        %1051 = vrot.lane.b32.xlu0 %v942, 64
        %v1052 = vpop.permute.xlu0 %1051
        %1053 = vrot.lane.b32.xlu0 %v943, 64
        %v1054 = vpop.permute.xlu0 %1053
        %1055 = vrot.lane.b32.xlu0 %v944, 64
        %v1056 = vpop.permute.xlu0 %1055
        %1085 = vrot.lane.b32.xlu0 %v945, 96
        %v1086 = vpop.permute.xlu0 %1085
        %1087 = vrot.lane.b32.xlu0 %v946, 96
        %v1088 = vpop.permute.xlu0 %1087
        %1089 = vrot.lane.b32.xlu0 %v947, 96
        %v1090 = vpop.permute.xlu0 %1089
        %1091 = vrot.lane.b32.xlu0 %v948, 96
        %v1092 = vpop.permute.xlu0 %1091
        %1093 = vrot.lane.b32.xlu0 %v949, 96
        %v1094 = vpop.permute.xlu0 %1093
        %1095 = vrot.lane.b32.xlu0 %v950, 96
        %v1096 = vpop.permute.xlu0 %1095
        %1097 = vrot.lane.b32.xlu0 %v951, 96
        %v1098 = vpop.permute.xlu0 %1097
        %1099 = vrot.lane.b32.xlu0 %v952, 96
        %v1100 = vpop.permute.xlu0 %1099
        %1101 = vrot.lane.b32.xlu0 %v953, 96
        %v1102 = vpop.permute.xlu0 %1101
        %1103 = vrot.lane.b32.xlu0 %v954, 96
        %v1104 = vpop.permute.xlu0 %1103
        %1105 = vrot.lane.b32.xlu0 %v955, 96
        %v1106 = vpop.permute.xlu0 %1105
        %1107 = vrot.lane.b32.xlu0 %v956, 96
        %v1108 = vpop.permute.xlu0 %1107
        %1109 = vrot.lane.b32.xlu0 %v957, 96
        %v1110 = vpop.permute.xlu0 %1109
        %1111 = vrot.lane.b32.xlu0 %v958, 96
        %v1112 = vpop.permute.xlu0 %1111
        %vm1127 = vcmask 261120
        %v1128 = vsel %vm1127, %v903, %v974
        %v1129 = vsel %vm1127, %v904, %v976
        %v1130 = vsel %vm1127, %v905, %v978
        %v1131 = vsel %vm1127, %v906, %v980
        %v1132 = vsel %vm1127, %v907, %v982
        %v1133 = vsel %vm1127, %v908, %v984
        %v1134 = vsel %vm1127, %v909, %v986
        %v1135 = vsel %vm1127, %v910, %v988
        %v1136 = vsel %vm1127, %v911, %v990
        %v1137 = vsel %vm1127, %v912, %v992
        %v1138 = vsel %vm1127, %v913, %v994
        %v1139 = vsel %vm1127, %v914, %v996
        %v1140 = vsel %vm1127, %v915, %v998
        %v1141 = vsel %vm1127, %v916, %v1000
        %vm1142 = vcmask 523264
        %v1143 = vsel %vm1142, %v1128, %v1030
        %v1144 = vsel %vm1142, %v1129, %v1032
        %v1145 = vsel %vm1142, %v1130, %v1034
        %v1146 = vsel %vm1142, %v1131, %v1036
        %v1147 = vsel %vm1142, %v1132, %v1038
        %v1148 = vsel %vm1142, %v1133, %v1040
        %v1149 = vsel %vm1142, %v1134, %v1042
        %v1150 = vsel %vm1142, %v1135, %v1044
        %v1151 = vsel %vm1142, %v1136, %v1046
        %v1152 = vsel %vm1142, %v1137, %v1048
        %v1153 = vsel %vm1142, %v1138, %v1050
        %v1154 = vsel %vm1142, %v1139, %v1052
        %v1155 = vsel %vm1142, %v1140, %v1054
        %v1156 = vsel %vm1142, %v1141, %v1056
        %vm1157 = vcmask 785408
        %v1158 = vsel %vm1157, %v1143, %v1086
        %v1159 = vsel %vm1157, %v1144, %v1088
        %v1160 = vsel %vm1157, %v1145, %v1090
        %v1161 = vsel %vm1157, %v1146, %v1092
        %v1162 = vsel %vm1157, %v1147, %v1094
        %v1163 = vsel %vm1157, %v1148, %v1096
        %v1164 = vsel %vm1157, %v1149, %v1098
        %v1165 = vsel %vm1157, %v1150, %v1100
        %v1166 = vsel %vm1157, %v1151, %v1102
        %v1167 = vsel %vm1157, %v1152, %v1104
        %v1168 = vsel %vm1157, %v1153, %v1106
        %v1169 = vsel %vm1157, %v1154, %v1108
        %v1170 = vsel %vm1157, %v1155, %v1110
        %v1171 = vsel %vm1157, %v1156, %v1112
        %v1173 = vlaneseq
        %v1174 = vshrl.u32 %v1173, 7
        %v1175 = vsub.s32 0, %v1174
        %v1176 = vrot.slane %v413, %v1175
        %1178 = vmatprep.subr.mxu0 0.0
        %1179 = vmatpush1.msra.mxu0 %v349
        %1180 = vmatprep.subr.mxu0 0.0
        %1181 = vmatpush1.msra.mxu0 %v350
        %1182 = vmatprep.subr.mxu0 0.0
        %1183 = vmatpush1.msra.mxu0 %v351
        %1184 = vmatprep.subr.mxu0 0.0
        %1185 = vmatpush1.msra.mxu0 %v352
        %1186 = vmatprep.subr.mxu0 0.0
        %1187 = vmatpush1.msra.mxu0 %v353
        %1188 = vmatprep.subr.mxu0 0.0
        %1189 = vmatpush1.msra.mxu0 %v354
        %1190 = vmatprep.subr.mxu0 0.0
        %1191 = vmatpush1.msra.mxu0 %v355
        %1192 = vmatprep.subr.mxu0 0.0
        %1193 = vmatpush1.msra.mxu0 %v356
        %1194 = vmatprep.subr.mxu0 0.0
        %1195 = vmatpush1.msra.mxu0 %v357
        %1196 = vmatprep.subr.mxu0 0.0
        %1197 = vmatpush1.msra.mxu0 %v358
        %1198 = vmatprep.subr.mxu0 0.0
        %1199 = vmatpush1.msra.mxu0 %v359
        %1200 = vmatprep.subr.mxu0 0.0
        %1201 = vmatpush1.msra.mxu0 %v360
        %1202 = vmatprep.subr.mxu0 0.0
        %1203 = vmatpush1.msra.mxu0 %v361
        %1204 = vmatprep.subr.mxu0 0.0
        %1205 = vmatpush1.msra.mxu0 %v362
        %1206 = vmatprep.subr.mxu0 0.0
        %1207 = vmatpush1.msra.mxu0 %v363
        %1208 = vmatprep.subr.mxu0 0.0
        %1209 = vmatpush1.msra.mxu0 %v364
        %1210 = vmatprep.subr.mxu0 0.0
        %1211 = vmatpush1.msra.mxu0 %v365
        %1212 = vmatprep.subr.mxu0 0.0
        %1213 = vmatpush1.msra.mxu0 %v366
        %1214 = vmatprep.subr.mxu0 0.0
        %1215 = vmatpush1.msra.mxu0 %v367
        %1216 = vmatprep.subr.mxu0 0.0
        %1217 = vmatpush1.msra.mxu0 %v368
        %1218 = vmatprep.subr.mxu0 0.0
        %1219 = vmatpush1.msra.mxu0 %v369
        %1220 = vmatprep.subr.mxu0 0.0
        %1221 = vmatpush1.msra.mxu0 %v370
        %1222 = vmatprep.subr.mxu0 0.0
        %1223 = vmatpush1.msra.mxu0 %v371
        %1224 = vmatprep.subr.mxu0 0.0
        %1225 = vmatpush1.msra.mxu0 %v372
        %1226 = vmatprep.subr.mxu0 0.0
        %1227 = vmatpush1.msra.mxu0 %v373
        %1228 = vmatprep.subr.mxu0 0.0
        %1229 = vmatpush1.msra.mxu0 %v374
        %1230 = vmatprep.subr.mxu0 0.0
        %1231 = vmatpush1.msra.mxu0 %v375
        %1232 = vmatprep.subr.mxu0 0.0
        %1233 = vmatpush1.msra.mxu0 %v376
        %1234 = vmatprep.subr.mxu0 0.0
        %1235 = vmatpush1.msra.mxu0 %v377
        %1236 = vmatprep.subr.mxu0 0.0
        %1237 = vmatpush1.msra.mxu0 %v378
        %1238 = vmatprep.subr.mxu0 0.0
        %1239 = vmatpush1.msra.mxu0 %v379
        %1240 = vmatprep.subr.mxu0 0.0
        %1241 = vmatpush1.msra.mxu0 %v380
        %1242 = vmatprep.mubr.f32.mxu0 %v1165
        %1243 = vmatmul.mubr.f32.gmra.mrb[0].mxu0 %v1158
        %v1244 = vpop.f32.mrb[0].mxu0
        %v1245 = vadd.f32 %v1176, %v1244
        %v1246 = vpop.f32.mrb[0].mxu0
        %1247 = vmatprep.mubr.f32.mxu0 %v1166
        %1248 = vmatmul.mubr.f32.gmra.mrb[0].mxu0 %v1159
        %v1249 = vpop.f32.mrb[0].mxu0
        %v1250 = vadd.f32 %v1176, %v1249
        %v1251 = vpop.f32.mrb[0].mxu0
        %1252 = vmatprep.mubr.f32.mxu0 %v1167
        %1253 = vmatmul.mubr.f32.gmra.mrb[0].mxu0 %v1160
        %v1254 = vpop.f32.mrb[0].mxu0
        %v1255 = vadd.f32 %v1176, %v1254
        %v1256 = vpop.f32.mrb[0].mxu0
        %1257 = vmatprep.mubr.f32.mxu0 %v1168
        %1258 = vmatmul.mubr.f32.gmra.mrb[0].mxu0 %v1161
        %v1259 = vpop.f32.mrb[0].mxu0
        %v1260 = vadd.f32 %v1176, %v1259
        %v1261 = vpop.f32.mrb[0].mxu0
        %1262 = vmatprep.mubr.f32.mxu0 %v1169
        %1263 = vmatmul.mubr.f32.gmra.mrb[0].mxu0 %v1162
        %v1264 = vpop.f32.mrb[0].mxu0
        %v1265 = vadd.f32 %v1176, %v1264
        %v1266 = vpop.f32.mrb[0].mxu0
        %1267 = vmatprep.mubr.f32.mxu0 %v1170
        %1268 = vmatmul.mubr.f32.gmra.mrb[0].mxu0 %v1163
        %v1269 = vpop.f32.mrb[0].mxu0
        %v1270 = vadd.f32 %v1176, %v1269
        %v1271 = vpop.f32.mrb[0].mxu0
        %1272 = vdwg.mxu0
        %1273 = vmatprep.subr.mxu0 0.0
        %1274 = vmatpush1.msra.mxu0 %v381
        %1275 = vmatprep.subr.mxu0 0.0
        %1276 = vmatpush1.msra.mxu0 %v382
        %1277 = vmatprep.subr.mxu0 0.0
        %1278 = vmatpush1.msra.mxu0 %v383
        %1279 = vmatprep.subr.mxu0 0.0
        %1280 = vmatpush1.msra.mxu0 %v384
        %1281 = vmatprep.subr.mxu0 0.0
        %1282 = vmatpush1.msra.mxu0 %v385
        %1283 = vmatprep.subr.mxu0 0.0
        %1284 = vmatpush1.msra.mxu0 %v386
        %1285 = vmatprep.subr.mxu0 0.0
        %1286 = vmatpush1.msra.mxu0 %v387
        %1287 = vmatprep.subr.mxu0 0.0
        %1288 = vmatpush1.msra.mxu0 %v388
        %1289 = vmatprep.subr.mxu0 0.0
        %1290 = vmatpush1.msra.mxu0 %v389
        %1291 = vmatprep.subr.mxu0 0.0
        %1292 = vmatpush1.msra.mxu0 %v390
        %1293 = vmatprep.subr.mxu0 0.0
        %1294 = vmatpush1.msra.mxu0 %v391
        %1295 = vmatprep.subr.mxu0 0.0
        %1296 = vmatpush1.msra.mxu0 %v392
        %1297 = vmatprep.subr.mxu0 0.0
        %1298 = vmatpush1.msra.mxu0 %v393
        %1299 = vmatprep.subr.mxu0 0.0
        %1300 = vmatpush1.msra.mxu0 %v394
        %1301 = vmatprep.subr.mxu0 0.0
        %1302 = vmatpush1.msra.mxu0 %v395
        %1303 = vmatprep.subr.mxu0 0.0
        %1304 = vmatpush1.msra.mxu0 %v396
        %1305 = vmatprep.subr.mxu0 0.0
        %1306 = vmatpush1.msra.mxu0 %v397
        %1307 = vmatprep.subr.mxu0 0.0
        %1308 = vmatpush1.msra.mxu0 %v398
        %1309 = vmatprep.subr.mxu0 0.0
        %1310 = vmatpush1.msra.mxu0 %v399
        %1311 = vmatprep.subr.mxu0 0.0
        %1312 = vmatpush1.msra.mxu0 %v400
        %1313 = vmatprep.subr.mxu0 0.0
        %1314 = vmatpush1.msra.mxu0 %v401
        %1315 = vmatprep.subr.mxu0 0.0
        %1316 = vmatpush1.msra.mxu0 %v402
        %1317 = vmatprep.subr.mxu0 0.0
        %1318 = vmatpush1.msra.mxu0 %v403
        %1319 = vmatprep.subr.mxu0 0.0
        %1320 = vmatpush1.msra.mxu0 %v404
        %1321 = vmatprep.subr.mxu0 0.0
        %1322 = vmatpush1.msra.mxu0 %v405
        %1323 = vmatprep.subr.mxu0 0.0
        %1324 = vmatpush1.msra.mxu0 %v406
        %1325 = vmatprep.subr.mxu0 0.0
        %1326 = vmatpush1.msra.mxu0 %v407
        %1327 = vmatprep.subr.mxu0 0.0
        %1328 = vmatpush1.msra.mxu0 %v408
        %1329 = vmatprep.subr.mxu0 0.0
        %1330 = vmatpush1.msra.mxu0 %v409
        %1331 = vmatprep.subr.mxu0 0.0
        %1332 = vmatpush1.msra.mxu0 %v410
        %1333 = vmatprep.subr.mxu0 0.0
        %1334 = vmatpush1.msra.mxu0 %v411
        %1335 = vmatprep.subr.mxu0 0.0
        %1336 = vmatpush1.msra.mxu0 %v412
        %1337 = vmatprep.mubr.f32.mxu0 %v1166
        %1338 = vmatmul.mubr.f32.gmra.mrb[0].mxu0 %v1159
        %v1339 = vpop.f32.mrb[0].mxu0
        %v1340 = vadd.f32 %v1245, %v1339
        %v1341 = vpop.f32.mrb[0].mxu0
        %1342 = vmatprep.mubr.f32.mxu0 %v1167
        %1343 = vmatmul.mubr.f32.gmra.mrb[0].mxu0 %v1160
        %v1344 = vpop.f32.mrb[0].mxu0
        %v1345 = vadd.f32 %v1250, %v1344
        %v1346 = vpop.f32.mrb[0].mxu0
        %1347 = vmatprep.mubr.f32.mxu0 %v1168
        %1348 = vmatmul.mubr.f32.gmra.mrb[0].mxu0 %v1161
        %v1349 = vpop.f32.mrb[0].mxu0
        %v1350 = vadd.f32 %v1255, %v1349
        %v1351 = vpop.f32.mrb[0].mxu0
        %1352 = vmatprep.mubr.f32.mxu0 %v1169
        %1353 = vmatmul.mubr.f32.gmra.mrb[0].mxu0 %v1162
        %v1354 = vpop.f32.mrb[0].mxu0
        %v1355 = vadd.f32 %v1260, %v1354
        %v1356 = vpop.f32.mrb[0].mxu0
        %1357 = vmatprep.mubr.f32.mxu0 %v1170
        %1358 = vmatmul.mubr.f32.gmra.mrb[0].mxu0 %v1163
        %v1359 = vpop.f32.mrb[0].mxu0
        %v1360 = vadd.f32 %v1265, %v1359
        %v1361 = vpop.f32.mrb[0].mxu0
        %1362 = vmatprep.mubr.f32.mxu0 %v1171
        %1363 = vmatmul.mubr.f32.gmra.mrb[0].mxu0 %v1164
        %v1364 = vpop.f32.mrb[0].mxu0
        %v1365 = vadd.f32 %v1270, %v1364
        %v1366 = vpop.f32.mrb[0].mxu0
        %1367 = vdwg.mxu0
        %v1368 = vmax.f32 %v1340, 0.0
        %v1369 = vmax.f32 %v1345, 0.0
        %v1370 = vmax.f32 %v1350, 0.0
        %v1371 = vmax.f32 %v1355, 0.0
        %v1372 = vmax.f32 %v1360, 0.0
        %v1373 = vmax.f32 %v1365, 0.0
        %v1375 = vrot.slane %v1369, 4
        %v1378 = vrot.slane %v1371, 4
        %vm1380 = vcmask 1043456
        %v1381 = vsel %vm1380, %v1368, %v1375
        %v1382 = vsel %vm1380, %v1370, %v1378
        %v1384 = vrot.slane %v1368, 1
        %v1386 = vrot.slane %v1369, 5
        %v1389 = vrot.slane %v1370, 1
        %v1391 = vrot.slane %v1371, 5
        %v1393 = vsel %vm1380, %v1384, %v1386
        %v1394 = vsel %vm1380, %v1389, %v1391
        %v1395 = vrot.slane %v1368, 2
        %v1397 = vrot.slane %v1369, 6
        %v1399 = vrot.slane %v1370, 2
        %v1401 = vrot.slane %v1371, 6
        %v1403 = vsel %vm1380, %v1395, %v1397
        %v1404 = vsel %vm1380, %v1399, %v1401
        %v1405 = vrot.slane %v1370, 4
        %v1408 = vrot.slane %v1372, 4
        %v1410 = vsel %vm1380, %v1369, %v1405
        %v1411 = vsel %vm1380, %v1371, %v1408
        %v1412 = vrot.slane %v1369, 1
        %v1414 = vrot.slane %v1370, 5
        %v1416 = vrot.slane %v1371, 1
        %v1418 = vrot.slane %v1372, 5
        %v1420 = vsel %vm1380, %v1412, %v1414
        %v1421 = vsel %vm1380, %v1416, %v1418
        %v1422 = vrot.slane %v1369, 2
        %v1424 = vrot.slane %v1370, 6
        %v1426 = vrot.slane %v1371, 2
        %v1428 = vrot.slane %v1372, 6
        %v1430 = vsel %vm1380, %v1422, %v1424
        %v1431 = vsel %vm1380, %v1426, %v1428
        %v1433 = vrot.slane %v1373, 4
        %v1435 = vsel %vm1380, %v1372, %v1433
        %v1436 = vrot.slane %v1372, 1
        %v1438 = vrot.slane %v1373, 5
        %v1440 = vsel %vm1380, %v1436, %v1438
        %v1441 = vrot.slane %v1372, 2
        %v1443 = vrot.slane %v1373, 6
        %v1445 = vsel %vm1380, %v1441, %v1443
        %1448 = vrot.lane.b32.xlu0 %v1393, 64
        %v1449 = vpop.permute.xlu0 %1448
        %1450 = vrot.lane.b32.xlu0 %v1394, 64
        %v1451 = vpop.permute.xlu0 %1450
        %1456 = vrot.lane.b32.xlu0 %v1410, 64
        %v1457 = vpop.permute.xlu0 %1456
        %1458 = vrot.lane.b32.xlu0 %v1411, 64
        %v1459 = vpop.permute.xlu0 %1458
        %1464 = vrot.lane.b32.xlu0 %v1430, 64
        %v1465 = vpop.permute.xlu0 %1464
        %1466 = vrot.lane.b32.xlu0 %v1431, 64
        %v1467 = vpop.permute.xlu0 %1466
        %1471 = vrot.lane.b32.xlu0 %v1440, 64
        %v1472 = vpop.permute.xlu0 %1471
        %v1474 = vsel %vm1142, %v1381, %v1449
        %v1475 = vsel %vm1142, %v1382, %v1451
        %v1476 = vsel %vm1142, %v1403, %v1457
        %v1477 = vsel %vm1142, %v1404, %v1459
        %v1478 = vsel %vm1142, %v1420, %v1465
        %v1479 = vsel %vm1142, %v1421, %v1467
        %v1480 = vsel %vm1142, %v1435, %v1472
        %v1482 = vlaneseq
        %v1483 = vshrl.u32 %v1482, 7
        %v1484 = vsub.s32 0, %v1483
        %v1485 = vrot.slane %v486, %v1484
        %v1488 = vsel %vm1142, %v1404, 0
        %v1491 = vsel %vm1142, %v1445, 0
        %1493 = vmatprep.subr.mxu0 0.0
        %1494 = vmatpush1.msra.mxu0 %v414
        %1495 = vmatprep.subr.mxu0 0.0
        %1496 = vmatpush1.msra.mxu0 %v415
        %1497 = vmatprep.subr.mxu0 0.0
        %1498 = vmatpush1.msra.mxu0 %v416
        %1499 = vmatprep.subr.mxu0 0.0
        %1500 = vmatpush1.msra.mxu0 %v417
        %1501 = vmatprep.subr.mxu0 0.0
        %1502 = vmatpush1.msra.mxu0 %v418
        %1503 = vmatprep.subr.mxu0 0.0
        %1504 = vmatpush1.msra.mxu0 %v419
        %1505 = vmatprep.subr.mxu0 0.0
        %1506 = vmatpush1.msra.mxu0 %v420
        %1507 = vmatprep.subr.mxu0 0.0
        %1508 = vmatpush1.msra.mxu0 %v421
        %1509 = vmatprep.subr.mxu0 0.0
        %1510 = vmatpush1.msra.mxu0 %v422
        %1511 = vmatprep.subr.mxu0 0.0
        %1512 = vmatpush1.msra.mxu0 %v423
        %1513 = vmatprep.subr.mxu0 0.0
        %1514 = vmatpush1.msra.mxu0 %v424
        %1515 = vmatprep.subr.mxu0 0.0
        %1516 = vmatpush1.msra.mxu0 %v425
        %1517 = vmatprep.subr.mxu0 0.0
        %1518 = vmatpush1.msra.mxu0 %v426
        %1519 = vmatprep.subr.mxu0 0.0
        %1520 = vmatpush1.msra.mxu0 %v427
        %1521 = vmatprep.subr.mxu0 0.0
        %1522 = vmatpush1.msra.mxu0 %v428
        %1523 = vmatprep.subr.mxu0 0.0
        %1524 = vmatpush1.msra.mxu0 %v429
        %1525 = vmatprep.subr.mxu0 0.0
        %1526 = vmatpush1.msra.mxu0 %v430
        %1527 = vmatprep.subr.mxu0 0.0
        %1528 = vmatpush1.msra.mxu0 %v431
        %1529 = vmatprep.subr.mxu0 0.0
        %1530 = vmatpush1.msra.mxu0 %v432
        %1531 = vmatprep.subr.mxu0 0.0
        %1532 = vmatpush1.msra.mxu0 %v433
        %1533 = vmatprep.subr.mxu0 0.0
        %1534 = vmatpush1.msra.mxu0 %v434
        %1535 = vmatprep.subr.mxu0 0.0
        %1536 = vmatpush1.msra.mxu0 %v435
        %1537 = vmatprep.subr.mxu0 0.0
        %1538 = vmatpush1.msra.mxu0 %v436
        %1539 = vmatprep.subr.mxu0 0.0
        %1540 = vmatpush1.msra.mxu0 %v437
        %1541 = vmatprep.subr.mxu0 0.0
        %1542 = vmatpush1.msra.mxu0 %v438
        %1543 = vmatprep.subr.mxu0 0.0
        %1544 = vmatpush1.msra.mxu0 %v439
        %1545 = vmatprep.subr.mxu0 0.0
        %1546 = vmatpush1.msra.mxu0 %v440
        %1547 = vmatprep.subr.mxu0 0.0
        %1548 = vmatpush1.msra.mxu0 %v441
        %1549 = vmatprep.subr.mxu0 0.0
        %1550 = vmatpush1.msra.mxu0 %v442
        %1551 = vmatprep.subr.mxu0 0.0
        %1552 = vmatpush1.msra.mxu0 %v443
        %1553 = vmatprep.subr.mxu0 0.0
        %1554 = vmatpush1.msra.mxu0 %v444
        %1555 = vmatprep.subr.mxu0 0.0
        %1556 = vmatpush1.msra.mxu0 %v445
        %1557 = vmatprep.mubr.f32.mxu0 %v1476
        %1558 = vmatmul.mubr.f32.gmra.mrb[0].mxu0 %v1474
        %v1559 = vpop.f32.mrb[0].mxu0
        %v1560 = vadd.f32 %v1485, %v1559
        %v1561 = vpop.f32.mrb[0].mxu0
        %1562 = vmatprep.mubr.f32.mxu0 %v1477
        %1563 = vmatmul.mubr.f32.gmra.mrb[0].mxu0 %v1475
        %v1564 = vpop.f32.mrb[0].mxu0
        %v1565 = vadd.f32 %v1485, %v1564
        %v1566 = vpop.f32.mrb[0].mxu0
        %1567 = vdwg.mxu0
        %1568 = vmatprep.subr.mxu0 0.0
        %1569 = vmatpush1.msra.mxu0 %v446
        %1570 = vmatprep.subr.mxu0 0.0
        %1571 = vmatpush1.msra.mxu0 %v447
        %1572 = vmatprep.subr.mxu0 0.0
        %1573 = vmatpush1.msra.mxu0 %v448
        %1574 = vmatprep.subr.mxu0 0.0
        %1575 = vmatpush1.msra.mxu0 %v449
        %1576 = vmatprep.subr.mxu0 0.0
        %1577 = vmatpush1.msra.mxu0 %v450
        %1578 = vmatprep.subr.mxu0 0.0
        %1579 = vmatpush1.msra.mxu0 %v451
        %1580 = vmatprep.subr.mxu0 0.0
        %1581 = vmatpush1.msra.mxu0 %v452
        %1582 = vmatprep.subr.mxu0 0.0
        %1583 = vmatpush1.msra.mxu0 %v453
        %1584 = vmatprep.subr.mxu0 0.0
        %1585 = vmatpush1.msra.mxu0 %v454
        %1586 = vmatprep.subr.mxu0 0.0
        %1587 = vmatpush1.msra.mxu0 %v455
        %1588 = vmatprep.subr.mxu0 0.0
        %1589 = vmatpush1.msra.mxu0 %v456
        %1590 = vmatprep.subr.mxu0 0.0
        %1591 = vmatpush1.msra.mxu0 %v457
        %1592 = vmatprep.subr.mxu0 0.0
        %1593 = vmatpush1.msra.mxu0 %v458
        %1594 = vmatprep.subr.mxu0 0.0
        %1595 = vmatpush1.msra.mxu0 %v459
        %1596 = vmatprep.subr.mxu0 0.0
        %1597 = vmatpush1.msra.mxu0 %v460
        %1598 = vmatprep.subr.mxu0 0.0
        %1599 = vmatpush1.msra.mxu0 %v461
        %1600 = vmatprep.subr.mxu0 0.0
        %1601 = vmatpush1.msra.mxu0 %v462
        %1602 = vmatprep.subr.mxu0 0.0
        %1603 = vmatpush1.msra.mxu0 %v463
        %1604 = vmatprep.subr.mxu0 0.0
        %1605 = vmatpush1.msra.mxu0 %v464
        %1606 = vmatprep.subr.mxu0 0.0
        %1607 = vmatpush1.msra.mxu0 %v465
        %1608 = vmatprep.subr.mxu0 0.0
        %1609 = vmatpush1.msra.mxu0 %v466
        %1610 = vmatprep.subr.mxu0 0.0
        %1611 = vmatpush1.msra.mxu0 %v467
        %1612 = vmatprep.subr.mxu0 0.0
        %1613 = vmatpush1.msra.mxu0 %v468
        %1614 = vmatprep.subr.mxu0 0.0
        %1615 = vmatpush1.msra.mxu0 %v469
        %1616 = vmatprep.subr.mxu0 0.0
        %1617 = vmatpush1.msra.mxu0 %v470
        %1618 = vmatprep.subr.mxu0 0.0
        %1619 = vmatpush1.msra.mxu0 %v471
        %1620 = vmatprep.subr.mxu0 0.0
        %1621 = vmatpush1.msra.mxu0 %v472
        %1622 = vmatprep.subr.mxu0 0.0
        %1623 = vmatpush1.msra.mxu0 %v473
        %1624 = vmatprep.subr.mxu0 0.0
        %1625 = vmatpush1.msra.mxu0 %v474
        %1626 = vmatprep.subr.mxu0 0.0
        %1627 = vmatpush1.msra.mxu0 %v475
        %1628 = vmatprep.subr.mxu0 0.0
        %1629 = vmatpush1.msra.mxu0 %v476
        %1630 = vmatprep.subr.mxu0 0.0
        %1631 = vmatpush1.msra.mxu0 %v477
        %1632 = vmatprep.mubr.f32.mxu0 %v1475
        %1633 = vmatmul.mubr.f32.gmra.mrb[0].mxu0 %v1478
        %v1634 = vpop.f32.mrb[0].mxu0
        %v1635 = vadd.f32 %v1560, %v1634
        %v1636 = vpop.f32.mrb[0].mxu0
        %1637 = vmatprep.mubr.f32.mxu0 %v1480
        %1638 = vmatmul.mubr.f32.gmra.mrb[0].mxu0 %v1479
        %v1639 = vpop.f32.mrb[0].mxu0
        %v1640 = vadd.f32 %v1565, %v1639
        %v1641 = vpop.f32.mrb[0].mxu0
        %1642 = vdwg.mxu0
        %1643 = vmatprep.subr.mxu0 0.0
        %1644 = vmatpush1.msra.mxu0 %v478
        %1645 = vmatprep.subr.mxu0 0.0
        %1646 = vmatpush1.msra.mxu0 %v479
        %1647 = vmatprep.subr.mxu0 0.0
        %1648 = vmatpush1.msra.mxu0 %v480
        %1649 = vmatprep.subr.mxu0 0.0
        %1650 = vmatpush1.msra.mxu0 %v481
        %1651 = vmatprep.subr.mxu0 0.0
        %1652 = vmatpush1.msra.mxu0 %v482
        %1653 = vmatprep.subr.mxu0 0.0
        %1654 = vmatpush1.msra.mxu0 %v483
        %1655 = vmatprep.subr.mxu0 0.0
        %1656 = vmatpush1.msra.mxu0 %v484
        %1657 = vmatprep.subr.mxu0 0.0
        %1658 = vmatpush1.msra.mxu0 %v485
        %1659 = vmatprep.subr.mxu0 0.0
        %1660 = vmatpush1.msra.mxu0 0.0
        %1661 = vmatprep.subr.mxu0 0.0
        %1662 = vmatpush1.msra.mxu0 0.0
        %1663 = vmatprep.subr.mxu0 0.0
        %1664 = vmatpush1.msra.mxu0 0.0
        %1665 = vmatprep.subr.mxu0 0.0
        %1666 = vmatpush1.msra.mxu0 0.0
        %1667 = vmatprep.subr.mxu0 0.0
        %1668 = vmatpush1.msra.mxu0 0.0
        %1669 = vmatprep.subr.mxu0 0.0
        %1670 = vmatpush1.msra.mxu0 0.0
        %1671 = vmatprep.subr.mxu0 0.0
        %1672 = vmatpush1.msra.mxu0 0.0
        %1673 = vmatprep.subr.mxu0 0.0
        %1674 = vmatpush1.msra.mxu0 0.0
        %1675 = vmatprep.subr.mxu0 0.0
        %1676 = vmatpush1.msra.mxu0 0.0
        %1677 = vmatprep.subr.mxu0 0.0
        %1678 = vmatpush1.msra.mxu0 0.0
        %1679 = vmatprep.subr.mxu0 0.0
        %1680 = vmatpush1.msra.mxu0 0.0
        %1681 = vmatprep.subr.mxu0 0.0
        %1682 = vmatpush1.msra.mxu0 0.0
        %1683 = vmatprep.subr.mxu0 0.0
        %1684 = vmatpush1.msra.mxu0 0.0
        %1685 = vmatprep.subr.mxu0 0.0
        %1686 = vmatpush1.msra.mxu0 0.0
        %1687 = vmatprep.subr.mxu0 0.0
        %1688 = vmatpush1.msra.mxu0 0.0
        %1689 = vmatprep.subr.mxu0 0.0
        %1690 = vmatpush1.msra.mxu0 0.0
        %1691 = vmatprep.subr.mxu0 0.0
        %1692 = vmatpush1.msra.mxu0 0.0
        %1693 = vmatprep.subr.mxu0 0.0
        %1694 = vmatpush1.msra.mxu0 0.0
        %1695 = vmatprep.subr.mxu0 0.0
        %1696 = vmatpush1.msra.mxu0 0.0
        %1697 = vmatprep.subr.mxu0 0.0
        %1698 = vmatpush1.msra.mxu0 0.0
        %1699 = vmatprep.subr.mxu0 0.0
        %1700 = vmatpush1.msra.mxu0 0.0
        %1701 = vmatprep.subr.mxu0 0.0
        %1702 = vmatpush1.msra.mxu0 0.0
        %1703 = vmatprep.subr.mxu0 0.0
        %1704 = vmatpush1.msra.mxu0 0.0
        %1705 = vmatprep.subr.mxu0 0.0
        %1706 = vmatpush1.msra.mxu0 0.0
        %1707 = vmatprep.mubr.f32.mxu0 0.0
        %1708 = vmatmul.mubr.f32.gmra.mrb[0].mxu0 %v1488
        %v1709 = vpop.f32.mrb[0].mxu0
        %v1710 = vadd.f32 %v1635, %v1709
        %v1711 = vpop.f32.mrb[0].mxu0
        %1712 = vmatprep.mubr.f32.mxu0 0.0
        %1713 = vmatmul.mubr.f32.gmra.mrb[0].mxu0 %v1491
        %v1714 = vpop.f32.mrb[0].mxu0
        %v1715 = vadd.f32 %v1640, %v1714
        %v1716 = vpop.f32.mrb[0].mxu0
        %1717 = vdwg.mxu0
        %v1718 = vmax.f32 %v1710, 0.0
        %v1719 = vmax.f32 %v1715, 0.0
        %v1720 = vsel %vm1142, %v1718, 0.0
        %v1721 = vsel %vm1142, %v1719, 0.0
        %v1722 = vadd.f32 %v1720, %v1721
        %v1723 = vrot.slane %v1722, 4
        %v1724 = vadd.f32 %v1722, %v1723
        %v1725 = vrot.slane %v1724, 2
        %v1726 = vadd.f32 %v1724, %v1725
        %v1727 = vrot.slane %v1726, 1
        %v1728 = vadd.f32 %v1726, %v1727
        %v1729 = vrcp.pop 16.0
        %v1730 = vmul.f32 %v1728, %v1729
        %v1732 = vsel %vm1142, %v1730, 0
        %1734 = vmatprep.subr.mxu0 0.0
        %1735 = vmatpush1.msra.mxu0 %v487
        %1736 = vmatprep.subr.mxu0 0.0
        %1737 = vmatpush1.msra.mxu0 %v488
        %1738 = vmatprep.subr.mxu0 0.0
        %1739 = vmatpush1.msra.mxu0 %v489
        %1740 = vmatprep.subr.mxu0 0.0
        %1741 = vmatpush1.msra.mxu0 %v490
        %1742 = vmatprep.subr.mxu0 0.0
        %1743 = vmatpush1.msra.mxu0 %v491
        %1744 = vmatprep.subr.mxu0 0.0
        %1745 = vmatpush1.msra.mxu0 %v492
        %1746 = vmatprep.subr.mxu0 0.0
        %1747 = vmatpush1.msra.mxu0 %v493
        %1748 = vmatprep.subr.mxu0 0.0
        %1749 = vmatpush1.msra.mxu0 %v494
        %1750 = vmatprep.subr.mxu0 0.0
        %1751 = vmatpush1.msra.mxu0 0.0
        %1752 = vmatprep.subr.mxu0 0.0
        %1753 = vmatpush1.msra.mxu0 0.0
        %1754 = vmatprep.subr.mxu0 0.0
        %1755 = vmatpush1.msra.mxu0 0.0
        %1756 = vmatprep.subr.mxu0 0.0
        %1757 = vmatpush1.msra.mxu0 0.0
        %1758 = vmatprep.subr.mxu0 0.0
        %1759 = vmatpush1.msra.mxu0 0.0
        %1760 = vmatprep.subr.mxu0 0.0
        %1761 = vmatpush1.msra.mxu0 0.0
        %1762 = vmatprep.subr.mxu0 0.0
        %1763 = vmatpush1.msra.mxu0 0.0
        %1764 = vmatprep.subr.mxu0 0.0
        %1765 = vmatpush1.msra.mxu0 0.0
        %1766 = vmatprep.subr.mxu0 0.0
        %1767 = vmatpush1.msra.mxu0 0.0
        %1768 = vmatprep.subr.mxu0 0.0
        %1769 = vmatpush1.msra.mxu0 0.0
        %1770 = vmatprep.subr.mxu0 0.0
        %1771 = vmatpush1.msra.mxu0 0.0
        %1772 = vmatprep.subr.mxu0 0.0
        %1773 = vmatpush1.msra.mxu0 0.0
        %1774 = vmatprep.subr.mxu0 0.0
        %1775 = vmatpush1.msra.mxu0 0.0
        %1776 = vmatprep.subr.mxu0 0.0
        %1777 = vmatpush1.msra.mxu0 0.0
        %1778 = vmatprep.subr.mxu0 0.0
        %1779 = vmatpush1.msra.mxu0 0.0
        %1780 = vmatprep.subr.mxu0 0.0
        %1781 = vmatpush1.msra.mxu0 0.0
        %1782 = vmatprep.subr.mxu0 0.0
        %1783 = vmatpush1.msra.mxu0 0.0
        %1784 = vmatprep.subr.mxu0 0.0
        %1785 = vmatpush1.msra.mxu0 0.0
        %1786 = vmatprep.subr.mxu0 0.0
        %1787 = vmatpush1.msra.mxu0 0.0
        %1788 = vmatprep.subr.mxu0 0.0
        %1789 = vmatpush1.msra.mxu0 0.0
        %1790 = vmatprep.subr.mxu0 0.0
        %1791 = vmatpush1.msra.mxu0 0.0
        %1792 = vmatprep.subr.mxu0 0.0
        %1793 = vmatpush1.msra.mxu0 0.0
        %1794 = vmatprep.subr.mxu0 0.0
        %1795 = vmatpush1.msra.mxu0 0.0
        %1796 = vmatprep.subr.mxu0 0.0
        %1797 = vmatpush1.msra.mxu0 0.0
        %1798 = vmatprep.mubr.f32.mxu0 0.0
        %1799 = vmatmul.mubr.f32.gmra.mrb[0].mxu0 %v1732
        %v1800 = vpop.f32.mrb[0].mxu0
        %v1801 = vadd.f32 %v495, %v1800
        %v1802 = vpop.f32.mrb[0].mxu0
        %1803 = vdwg.mxu0
        %vm1804 = vcmask 40960
        %1805 = vst.msk [vmem:[%s325] sm:$0x1] %vm1804, %v1801
        %s1806 = sand.u32 %s225, 1
        %s1807 = scalar_lea.sflag [#allocation3], %s1806
        %s1808 = sand.u32 %s225, 1
        %s1809 = scalar_lea.vmem [#allocation2], %s1808
        // Predicated region
        $region57: #{encoder_traj.1} parent=55 // pred_check
          %p1810 = pneg %p235
        $region58: #{encoder_traj.1} parent=55 // pred_check_branch
          %1812 = sbr.rel (%p1810) target = $region60
        $region59: #{encoder_traj.1} parent=55 // pred_region
          %s1814 = ssub.s32 16, 16
          %1815 = vsyncadd %s1807, %s1814
          %s1816 = smul.addr %s23, 16
          %s1817 = scalar_lea.hbm %s9, %s1816
          %s1819 = sshll.u32 %s1809, 4
          %s1820 = int_to_ptr.vmem [resolvable:$true] %s1819
          %1822 = dma.vmem_to_hbm [thread:$0]  %s1820, 16, %s1817, %s1807
        $region60: #{encoder_traj.1} parent=55 // pred_fallthru
          _
      $region56: #{encoder_traj.1} parent=5 // pred_fallthru
        _
      %p1823 = scmp.le.s32.totalorder 2, %s18
      // Predicated region
      $region61: #{encoder_traj.1} parent=5 // pred_check
        %p1824 = pneg %p1823
      $region62: #{encoder_traj.1} parent=5 // pred_check_branch
        %1826 = sbr.rel (%p1824) target = $region64
      $region63: #{encoder_traj.1} parent=5 // pred_region
        %s1827 = ssub.s32 %s18, 2
        // Predicated region
        $region65: #{encoder_traj.1} parent=63 // pred_check
          %p1828 = pneg %p241
        $region66: #{encoder_traj.1} parent=63 // pred_check_branch
          %1830 = sbr.rel (%p1828) target = $region68
        $region67: #{encoder_traj.1} parent=63 // pred_region
          %s1831 = sand.u32 %s226, 1
          %s1832 = scalar_lea.sflag [#allocation3], %s1831
          %s1833 = sand.u32 %s226, 1
          %s1834 = scalar_lea.vmem [#allocation2], %s1833
          %1835 = dma.done %s1832, 16
        $region68: #{encoder_traj.1} parent=63 // pred_fallthru
          _
      $region64: #{encoder_traj.1} parent=5 // pred_fallthru
        _
    $region6: #{encoder_traj.1} parent=1 // loop_footer
      %s22 = sadd.s32 1, %s18
    $region7: #{encoder_traj.1} parent=1 // loop_footer_branch
      %17 = sbr.rel target = $region3
    $region8: #{encoder_traj.1} parent=1 // loop_exit
      _
    %1836 = vsyncpa [#allocation3], 1
    %s1837 = scalar_lea.sflag [#allocation3], 1
    %1838 = vsyncpa %s1837, 1

</llo_original>
